<compile_context>
chip_gen: v6e
topology: v6e:2x2x1
jax: 0.10.0
libtpu: 0.0.40
codegen_flags: <defaults>
</compile_context>

<pallas_src>
import math
import functools

import jax
import jax.numpy as jnp
from jax import lax
from jax.experimental import pallas as pl
from jax.experimental.pallas import tpu as pltpu

_LN_EPS = 1e-5  # nn.LayerNorm default


# ---------------------------------------------------------------------------
# Helpers
# ---------------------------------------------------------------------------
def _pick_tile(dim, preferred):
    """Largest preferred tile that evenly divides `dim`; else the full dim.

    Full-dim fallback always satisfies the TPU (8, 128) block constraint.
    """
    for t in preferred:
        if dim >= t and dim % t == 0:
            return t
    return dim


def _vmem_limit_bytes():
    """Generation-aware VMEM budget: ~half of physical VMEM per TensorCore."""
    default = 32 * 1024 * 1024
    try:
        cap = int(pltpu.get_tpu_info().vmem_capacity_bytes)
        return int(min(max(cap // 2, default), 100 * 1024 * 1024))
    except Exception:  # pragma: no cover - conservative fallback
        return default


def _recip_newton(x):
    """approx reciprocal (EUP) + one VPU Newton step: ~1e-6 relative error."""
    r = pl.reciprocal(x, approx=True)
    return r * (2.0 - x * r)


def _erf(x):
    # Abramowitz & Stegun 7.1.26 (|abs err| <= 1.5e-7). Uses only ops with
    # guaranteed Mosaic lowerings; the divide is approx-recip + Newton so the
    # EUP only sees one exp per element.
    a1, a2, a3, a4, a5 = (0.254829592, -0.284496736, 1.421413741,
                          -1.453152027, 1.061405429)
    p = 0.3275911
    z = jnp.abs(x)
    t = _recip_newton(1.0 + p * z)
    poly = t * (a1 + t * (a2 + t * (a3 + t * (a4 + t * a5))))
    e = 1.0 - poly * jnp.exp(-z * z)
    return jnp.where(x >= 0, e, -e)


def _gelu_exact(x):
    # Matches nn.GELU() default (erf-exact) semantics.
    return 0.5 * x * (1.0 + _erf(x * 0.7071067811865476))


# ---------------------------------------------------------------------------
# Kernel 1: fused LayerNorm + Linear (+ optional exact GELU)
# ---------------------------------------------------------------------------
def _ln_linear_kernel(x_ref, g_ref, bln_ref, w_ref, b_ref, o_ref, xn_ref, *,
                      gelu):
    # Hoist LayerNorm out of the inner (output-column) grid axis: compute the
    # normalized, compute-dtype activations once per row tile and reuse them
    # for every output-column tile j.  (j axis is "arbitrary" -> sequential.)
    @pl.when(pl.program_id(1) == 0)
    def _():
        x = x_ref[...].astype(jnp.float32)
        mu = jnp.mean(x, axis=-1, keepdims=True)
        var = jnp.mean(jnp.square(x - mu), axis=-1, keepdims=True)
        xn = (x - mu) * lax.rsqrt(var + _LN_EPS)
        xn = xn * g_ref[...].astype(jnp.float32) + bln_ref[...].astype(jnp.float32)
        xn_ref[...] = xn.astype(xn_ref.dtype)

    # bf16 (compute-dtype) MXU feeds, f32 accumulation.
    acc = jnp.dot(xn_ref[...], w_ref[...], preferred_element_type=jnp.float32)
    acc = acc + b_ref[...].astype(jnp.float32)
    if gelu:
        acc = _gelu_exact(acc)
    o_ref[...] = acc.astype(o_ref.dtype)


def ln_linear(x2d, gamma, beta, w, b, *, gelu=False, out_dtype=None):
    """y = [gelu](layernorm(x2d) @ w + b).  x2d: (M, K), w: (K, N).

    Weights `w` should already be in the MXU compute dtype (e.g. bf16).
    """
    M, K = x2d.shape
    K2, N = w.shape
    assert K == K2
    if out_dtype is None:
        out_dtype = x2d.dtype
    out_dtype = jnp.dtype(out_dtype)
    # tm capped at 256: (tm,K)+(K,tn) full-K blocks plus the xn scratch must
    # fit comfortably on v7x's 64 MiB VMEM even for large K.
    tm = _pick_tile(M, (256, 128, 64, 32, 16, 8))
    tn = _pick_tile(N, (512, 256, 128))
    grid = (M // tm, N // tn)
    cost = pl.CostEstimate(
        flops=2 * M * K * N + 10 * M * K,
        transcendentals=(M * N if gelu else 0) + M,
        bytes_accessed=int(x2d.dtype.itemsize * M * K
                           + w.dtype.itemsize * K * N * (M // tm)  # re-stream
                           + out_dtype.itemsize * M * N
                           + 4 * (2 * K + N)),
    )
    return pl.pallas_call(
        functools.partial(_ln_linear_kernel, gelu=gelu),
        out_shape=jax.ShapeDtypeStruct((M, N), out_dtype),
        grid=grid,
        in_specs=[
            pl.BlockSpec((tm, K), lambda i, j: (i, 0)),   # LN needs the full row
            pl.BlockSpec((1, K), lambda i, j: (0, 0)),
            pl.BlockSpec((1, K), lambda i, j: (0, 0)),
            pl.BlockSpec((K, tn), lambda i, j: (0, j)),
            pl.BlockSpec((1, tn), lambda i, j: (0, j)),
        ],
        out_specs=pl.BlockSpec((tm, tn), lambda i, j: (i, j)),
        scratch_shapes=[pltpu.VMEM((tm, K), w.dtype)],    # hoisted LN output
        compiler_params=pltpu.CompilerParams(
            # j must be "arbitrary": the hoisted-LN scratch is written at j==0
            # and reused by later j steps on the same core.
            dimension_semantics=("parallel", "arbitrary"),
            vmem_limit_bytes=_vmem_limit_bytes(),
        ),
        cost_estimate=cost,
    )(x2d, gamma.reshape(1, K), beta.reshape(1, K), w, b.reshape(1, N))


# ---------------------------------------------------------------------------
# Kernel 2: tiled Linear with f32 accumulator + fused bias & residual add
# ---------------------------------------------------------------------------
def _matmul_bias_res_kernel(x_ref, w_ref, b_ref, r_ref, o_ref, acc_ref):
    @pl.when(pl.program_id(2) == 0)
    def _():
        acc_ref[...] = jnp.zeros(acc_ref.shape, acc_ref.dtype)

    acc_ref[...] += jnp.dot(x_ref[...], w_ref[...],
                            preferred_element_type=jnp.float32)

    @pl.when(pl.program_id(2) == pl.num_programs(2) - 1)
    def _():
        out = (acc_ref[...] + b_ref[...].astype(jnp.float32)
               + r_ref[...].astype(jnp.float32))
        o_ref[...] = out.astype(o_ref.dtype)


def linear_bias_residual(x2d, w, b, residual):
    """y = x2d @ w + b + residual (K-tiled, f32 VMEM accumulator, f32 out)."""
    M, K = x2d.shape
    K2, N = w.shape
    assert K == K2 and residual.shape == (M, N)
    # Large tm amortizes weight re-streaming ((M/tm)*K*N bytes) on v5e/v6e.
    tm = _pick_tile(M, (1024, 512, 256, 128, 64, 32, 16, 8))
    tn = _pick_tile(N, (512, 256, 128))
    tk = _pick_tile(K, (512, 256, 128))
    grid = (M // tm, N // tn, K // tk)
    # TODO(synk): on v5e consider pipeline_mode=pl.Buffered(3) on the weight
    # BlockSpec to hide the exposed weight DMA at the HBM roofline.
    cost = pl.CostEstimate(
        flops=2 * M * K * N,
        transcendentals=0,
        bytes_accessed=int(x2d.dtype.itemsize * M * K * (N // tn)
                           + w.dtype.itemsize * K * N * (M // tm)
                           + residual.dtype.itemsize * M * N
                           + residual.dtype.itemsize * M * N
                           + 4 * N),
    )
    return pl.pallas_call(
        _matmul_bias_res_kernel,
        out_shape=jax.ShapeDtypeStruct((M, N), residual.dtype),
        grid=grid,
        in_specs=[
            pl.BlockSpec((tm, tk), lambda i, j, k: (i, k)),
            pl.BlockSpec((tk, tn), lambda i, j, k: (k, j)),
            pl.BlockSpec((1, tn), lambda i, j, k: (0, j)),
            pl.BlockSpec((tm, tn), lambda i, j, k: (i, j)),
        ],
        out_specs=pl.BlockSpec((tm, tn), lambda i, j, k: (i, j)),
        scratch_shapes=[pltpu.VMEM((tm, tn), jnp.float32)],
        compiler_params=pltpu.CompilerParams(
            dimension_semantics=("parallel", "parallel", "arbitrary"),
            vmem_limit_bytes=_vmem_limit_bytes(),
        ),
        cost_estimate=cost,
    )(x2d, w, b.reshape(1, N), residual)


# ---------------------------------------------------------------------------
# Kernel 3: head-major flash attention (non-causal, online softmax)
# ---------------------------------------------------------------------------
def _flash_attn_kernel(q_ref, k_ref, v_ref, o_ref, m_ref, l_ref, acc_ref):
    ki = pl.program_id(2)

    @pl.when(ki == 0)
    def _():
        m_ref[...] = jnp.full(m_ref.shape, -jnp.inf, dtype=m_ref.dtype)
        l_ref[...] = jnp.zeros(l_ref.shape, dtype=l_ref.dtype)
        acc_ref[...] = jnp.zeros(acc_ref.shape, dtype=acc_ref.dtype)

    # Softmax scale is pre-folded into q (c_attn weights), so s needs no mul.
    # 'qd,kd->qk': consume k in its natural layout (no k.T transpose).
    s = lax.dot_general(q_ref[...], k_ref[...], (((1,), (1,)), ((), ())),
                        preferred_element_type=jnp.float32)
    m_prev = m_ref[...]
    m_new = jnp.maximum(m_prev, jnp.max(s, axis=-1, keepdims=True))
    alpha = jnp.exp(m_prev - m_new)
    p = jnp.exp(s - m_new)
    l_ref[...] = alpha * l_ref[...] + jnp.sum(p, axis=-1, keepdims=True)
    acc_ref[...] = alpha * acc_ref[...] + jnp.dot(
        p.astype(v_ref.dtype), v_ref[...], preferred_element_type=jnp.float32)
    m_ref[...] = m_new

    @pl.when(ki == pl.num_programs(2) - 1)
    def _():
        inv_l = _recip_newton(l_ref[...])
        o_ref[...] = (acc_ref[...] * inv_l).astype(o_ref.dtype)


def flash_attention(q, k, v):
    """q, k, v: (B*H, T, head_dim) -> (B*H, T, head_dim).

    Non-causal softmax attention (matches the reference SDPA call). One
    (batch*head) element per leading grid step, so every block is a full-width
    slab of the head and there is no sub-lane per-head slicing in the kernel.
    """
    BH, T, hd = q.shape
    assert k.shape == (BH, T, hd) and v.shape == (BH, T, hd)
    # Keep the (tq, tk) score tile at 128x128 by default to bound live ranges.
    tq = _pick_tile(T, (128, 256))
    tk = _pick_tile(T, (128, 256))
    grid = (BH, T // tq, T // tk)
    itemsize = q.dtype.itemsize
    cost = pl.CostEstimate(
        flops=4 * BH * T * T * hd,
        transcendentals=BH * T * T,
        bytes_accessed=int(itemsize * (BH * T * hd                 # q
                                       + 2 * BH * T * hd * (T // tq)  # k/v re-stream
                                       + BH * T * hd)),            # out
    )
    # TODO(synk): small head_dim (<128/<256) under-fills the MXU contraction on
    # the q.k^T dot; packing multiple heads per MXU call would lift utilization.
    return pl.pallas_call(
        _flash_attn_kernel,
        out_shape=jax.ShapeDtypeStruct((BH, T, hd), q.dtype),
        grid=grid,
        in_specs=[
            pl.BlockSpec((pl.Squeezed(), tq, hd), lambda bh, qi, ki: (bh, qi, 0)),
            pl.BlockSpec((pl.Squeezed(), tk, hd), lambda bh, qi, ki: (bh, ki, 0)),
            pl.BlockSpec((pl.Squeezed(), tk, hd), lambda bh, qi, ki: (bh, ki, 0)),
        ],
        out_specs=pl.BlockSpec((pl.Squeezed(), tq, hd),
                               lambda bh, qi, ki: (bh, qi, 0)),
        scratch_shapes=[
            pltpu.VMEM((tq, 1), jnp.float32),    # running max m
            pltpu.VMEM((tq, 1), jnp.float32),    # running sum l
            pltpu.VMEM((tq, hd), jnp.float32),   # output accumulator
        ],
        compiler_params=pltpu.CompilerParams(
            dimension_semantics=("parallel", "parallel", "arbitrary"),
            vmem_limit_bytes=_vmem_limit_bytes(),
        ),
        cost_estimate=cost,
    )(q, k, v)


# ---------------------------------------------------------------------------
# Block forward
# ---------------------------------------------------------------------------
def block_forward(x, params, n_head, compute_dtype=jnp.bfloat16):
    """Forward pass of the PyTorch `Block` (eval mode: dropout = identity).

    `compute_dtype` is the MXU feed dtype (bf16 by default); all matmuls
    accumulate in f32 and the residual stream stays in x.dtype.
    """
    B, T, C = x.shape
    assert C % n_head == 0
    hd = C // n_head
    M = B * T
    cd = jnp.dtype(compute_dtype)
    x2d = x.reshape(M, C)

    # Fold the softmax 1/sqrt(head_dim) scale into the q columns of c_attn
    # (one-time constant transform; removes the per-step VPU multiply).
    scale = 1.0 / math.sqrt(hd)
    col_scale = jnp.concatenate([jnp.full((C,), scale, jnp.float32),
                                 jnp.ones((2 * C,), jnp.float32)])
    w_attn = (params["w_attn"] * col_scale[None, :]).astype(cd)
    b_attn = params["b_attn"] * col_scale

    # --- attention branch: x + c_proj(attn(ln_1(x))) ---
    qkv2d = ln_linear(x2d, params["ln1_g"], params["ln1_b"],
                      w_attn, b_attn, out_dtype=cd)                 # (M, 3C)
    # Head-major q/k/v split (one-time XLA relayout mirroring the PyTorch
    # .view().transpose(1, 2)); every per-head operand the kernel sees is a
    # full slab, so there is no masked sub-lane slicing inside the kernel.
    # TODO(synk): when head_dim % 128 == 0 this transpose can be skipped by
    # lane-block indexing the packed qkv buffer directly from the flash kernel.
    qkv = qkv2d.reshape(B, T, 3, n_head, hd).transpose(2, 0, 3, 1, 4)
    q = qkv[0].reshape(B * n_head, T, hd)
    k = qkv[1].reshape(B * n_head, T, hd)
    v = qkv[2].reshape(B * n_head, T, hd)
    y = flash_attention(q, k, v)                                    # (BH, T, hd)
    y2d = y.reshape(B, n_head, T, hd).transpose(0, 2, 1, 3).reshape(M, C)
    x1 = linear_bias_residual(y2d, params["w_proj"].astype(cd),
                              params["b_proj"], residual=x2d)       # (M, C) f32

    # --- MLP branch: x1 + c_proj(gelu(c_fc(ln_2(x1)))) ---
    h = ln_linear(x1, params["ln2_g"], params["ln2_b"],
                  params["w_fc"].astype(cd), params["b_fc"],
                  gelu=True, out_dtype=cd)                          # (M, 4C)
    x2 = linear_bias_residual(h, params["w_fc_proj"].astype(cd),
                              params["b_fc_proj"], residual=x1)     # (M, C) f32

    # TODO(synk): nn.Dropout is identity in eval mode (implemented here);
    # training-mode dropout RNG is not implemented.
    return x2.reshape(B, T, C)


# ---------------------------------------------------------------------------
# Deterministic parameter init (nn.Linear-style uniform, LN gamma=1/beta=0)
# ---------------------------------------------------------------------------
def init_params(key, n_embd):
    ks = jax.random.split(key, 8)

    def linear_init(kw, kb, fan_in, fan_out):
        bound = 1.0 / math.sqrt(fan_in)
        w = jax.random.uniform(kw, (fan_in, fan_out), jnp.float32, -bound, bound)
        b = jax.random.uniform(kb, (fan_out,), jnp.float32, -bound, bound)
        return w, b

    w_attn, b_attn = linear_init(ks[0], ks[1], n_embd, 3 * n_embd)
    w_proj, b_proj = linear_init(ks[2], ks[3], n_embd, n_embd)
    w_fc, b_fc = linear_init(ks[4], ks[5], n_embd, 4 * n_embd)
    w_fc_proj, b_fc_proj = linear_init(ks[6], ks[7], 4 * n_embd, n_embd)
    return {
        "ln1_g": jnp.ones((n_embd,), jnp.float32),
        "ln1_b": jnp.zeros((n_embd,), jnp.float32),
        "w_attn": w_attn, "b_attn": b_attn,
        "w_proj": w_proj, "b_proj": b_proj,
        "ln2_g": jnp.ones((n_embd,), jnp.float32),
        "ln2_b": jnp.zeros((n_embd,), jnp.float32),
        "w_fc": w_fc, "b_fc": b_fc,
        "w_fc_proj": w_fc_proj, "b_fc_proj": b_fc_proj,
    }


# ---------------------------------------------------------------------------
# Pure-JAX reference for the correctness check
# ---------------------------------------------------------------------------
def reference_block(x, params, n_head):
    B, T, C = x.shape
    hd = C // n_head

    def layernorm(t, g, b):
        mu = jnp.mean(t, axis=-1, keepdims=True)
        var = jnp.mean(jnp.square(t - mu), axis=-1, keepdims=True)
        return (t - mu) / jnp.sqrt(var + _LN_EPS) * g + b

    def attn(t):
        qkv = t.reshape(B * T, C) @ params["w_attn"] + params["b_attn"]
        qkv = qkv.reshape(B, T, 3 * C)
        q, k, v = jnp.split(qkv, 3, axis=2)
        heads = lambda u: u.reshape(B, T, n_head, hd).transpose(0, 2, 1, 3)
        q, k, v = heads(q), heads(k), heads(v)
        s = jnp.einsum("bhqd,bhkd->bhqk", q, k) / math.sqrt(hd)
        p = jax.nn.softmax(s, axis=-1)
        y = jnp.einsum("bhqk,bhkd->bhqd", p, v)
        y = y.transpose(0, 2, 1, 3).reshape(B * T, C)
        y = y @ params["w_proj"] + params["b_proj"]
        return y.reshape(B, T, C)

    def mlp(t):
        h = t.reshape(B * T, C) @ params["w_fc"] + params["b_fc"]
        h = jax.nn.gelu(h, approximate=False)   # nn.GELU() default (erf-exact)
        y = h @ params["w_fc_proj"] + params["b_fc_proj"]
        return y.reshape(B, T, C)

    x = x + attn(layernorm(x, params["ln1_g"], params["ln1_b"]))
    x = x + mlp(layernorm(x, params["ln2_g"], params["ln2_b"]))
    return x


if __name__ == "__main__":
    # Small, lane/sublane-aligned shapes: B=2, T=128, C=128, 4 heads (hd=32).
    B, T, C, n_head = 2, 128, 128, 4

    key = jax.random.PRNGKey(0)
    kx, kp = jax.random.split(key)
    x = jax.random.normal(kx, (B, T, C), dtype=jnp.float32)
    params = init_params(kp, C)

    out = block_forward(x, params, n_head, compute_dtype=jnp.bfloat16)
    out = jax.block_until_ready(out)

    ref = reference_block(x, params, n_head)
    assert out.shape == (B, T, C)
    max_err = float(jnp.max(jnp.abs(out - ref)))
    # bf16 MXU feeds (f32 accumulation) vs the f32 reference: allow ~3e-2.
    assert jnp.allclose(out, ref, rtol=3e-2, atol=3e-2), (
        f"mismatch vs reference: max abs err = {max_err}")

    print("KERNEL_OK")
</pallas_src>

<mosaic_0001>
module attributes {stable_mosaic.version = 11 : i64} {
  func.func @_ln_linear_kernel(%arg0: i32, %arg1: i32, %arg2: memref<256x128xf32, #tpu.memory_space<vmem>>, %arg3: memref<1x128xf32, #tpu.memory_space<vmem>>, %arg4: memref<1x128xf32, #tpu.memory_space<vmem>>, %arg5: memref<128x128xbf16, #tpu.memory_space<vmem>>, %arg6: memref<1x128xf32, #tpu.memory_space<vmem>>, %arg7: memref<256x128xbf16, #tpu.memory_space<vmem>>, %arg8: memref<256x128xbf16, #tpu.memory_space<vmem>>) attributes {dimension_semantics = [#tpu.dimension_semantics<parallel>, #tpu.dimension_semantics<arbitrary>], iteration_bounds = array<i64: 1, 3>, scalar_prefetch = 0 : i64, scratch_operands = 1 : i64, tpu.core_type = #tpu.core_type<tc>, window_params = [{transform_indices = @transform_0, window_bounds = array<i64: 256, 128>}, {pipeline_mode = #tpu.pipeline_mode<synchronous>, transform_indices = @transform_1, window_bounds = array<i64: 1, 128>}, {pipeline_mode = #tpu.pipeline_mode<synchronous>, transform_indices = @transform_2, window_bounds = array<i64: 1, 128>}, {transform_indices = @transform_3, window_bounds = array<i64: 128, 128>}, {transform_indices = @transform_4, window_bounds = array<i64: 1, 128>}, {transform_indices = @transform_5, window_bounds = array<i64: 256, 128>}]} {
    %c0_i32 = arith.constant 0 : i32
    %0 = arith.cmpi eq, %arg1, %c0_i32 : i32
    %1 = arith.extui %0 : i1 to i32
    %c0_i32_0 = arith.constant 0 : i32
    %2 = arith.cmpi ne, %1, %c0_i32_0 : i32
    scf.if %2 {
      %c0_8 = arith.constant 0 : index
      %c0_9 = arith.constant 0 : index
      %11 = vector.load %arg2[%c0_8, %c0_9] : memref<256x128xf32, #tpu.memory_space<vmem>>, vector<256x128xf32>
      %cst_10 = arith.constant dense<0.000000e+00> : vector<256xf32>
      %12 = vector.multi_reduction <add>, %11, %cst_10 [1] : vector<256x128xf32> to vector<256xf32>
      %13 = vector.shape_cast %12 : vector<256xf32> to vector<256x1xf32>
      %cst_11 = arith.constant 1.280000e+02 : f32
      %14 = vector.broadcast %cst_11 : f32 to vector<256x1xf32>
      %15 = arith.divf %13, %14 : vector<256x1xf32>
      %16 = vector.broadcast %15 : vector<256x1xf32> to vector<256x128xf32>
      %17 = arith.subf %11, %16 : vector<256x128xf32>
      %18 = arith.mulf %17, %17 : vector<256x128xf32>
      %cst_12 = arith.constant dense<0.000000e+00> : vector<256xf32>
      %19 = vector.multi_reduction <add>, %18, %cst_12 [1] : vector<256x128xf32> to vector<256xf32>
      %20 = vector.shape_cast %19 : vector<256xf32> to vector<256x1xf32>
      %cst_13 = arith.constant 1.280000e+02 : f32
      %21 = vector.broadcast %cst_13 : f32 to vector<256x1xf32>
      %22 = arith.divf %20, %21 : vector<256x1xf32>
      %23 = vector.broadcast %15 : vector<256x1xf32> to vector<256x128xf32>
      %24 = arith.subf %11, %23 : vector<256x128xf32>
      %cst_14 = arith.constant 9.99999974E-6 : f32
      %25 = vector.broadcast %cst_14 : f32 to vector<256x1xf32>
      %26 = arith.addf %22, %25 : vector<256x1xf32>
      %27 = math.rsqrt %26 : vector<256x1xf32>
      %28 = vector.broadcast %27 : vector<256x1xf32> to vector<256x128xf32>
      %29 = arith.mulf %24, %28 : vector<256x128xf32>
      %c0_15 = arith.constant 0 : index
      %c0_16 = arith.constant 0 : index
      %30 = vector.load %arg3[%c0_15, %c0_16] : memref<1x128xf32, #tpu.memory_space<vmem>>, vector<1x128xf32>
      %31 = vector.broadcast %30 : vector<1x128xf32> to vector<256x128xf32>
      %32 = arith.mulf %29, %31 : vector<256x128xf32>
      %c0_17 = arith.constant 0 : index
      %c0_18 = arith.constant 0 : index
      %33 = vector.load %arg4[%c0_17, %c0_18] : memref<1x128xf32, #tpu.memory_space<vmem>>, vector<1x128xf32>
      %34 = vector.broadcast %33 : vector<1x128xf32> to vector<256x128xf32>
      %35 = arith.addf %32, %34 : vector<256x128xf32>
      %36 = arith.truncf %35 : vector<256x128xf32> to vector<256x128xbf16>
      %c0_19 = arith.constant 0 : index
      %c0_20 = arith.constant 0 : index
      %37 = vector.load %arg8[%c0_19, %c0_20] : memref<256x128xbf16, #tpu.memory_space<vmem>>, vector<256x128xbf16>
      tpu.vector_store %arg8[%c0_19, %c0_20], %36 {strides = array<i32>} : memref<256x128xbf16, #tpu.memory_space<vmem>>, vector<256x128xbf16>,
    } else {
    }
    %c0 = arith.constant 0 : index
    %c0_1 = arith.constant 0 : index
    %3 = vector.load %arg8[%c0, %c0_1] : memref<256x128xbf16, #tpu.memory_space<vmem>>, vector<256x128xbf16>
    %c0_2 = arith.constant 0 : index
    %c0_3 = arith.constant 0 : index
    %4 = vector.load %arg5[%c0_2, %c0_3] : memref<128x128xbf16, #tpu.memory_space<vmem>>, vector<128x128xbf16>
    %cst = arith.constant dense<0.000000e+00> : vector<256x128xf32>
    %5 = tpu.matmul %3, %4, %cst {dimension_numbers = #tpu.dot_dimension_numbers<[1], [0], [0], [1], [0, 0, 1, 1], [], []>} : vector<256x128xbf16>, vector<128x128xbf16>, vector<256x128xf32> -> vector<256x128xf32>
    %c0_4 = arith.constant 0 : index
    %c0_5 = arith.constant 0 : index
    %6 = vector.load %arg6[%c0_4, %c0_5] : memref<1x128xf32, #tpu.memory_space<vmem>>, vector<1x128xf32>
    %7 = vector.broadcast %6 : vector<1x128xf32> to vector<256x128xf32>
    %8 = arith.addf %5, %7 : vector<256x128xf32>
    %9 = arith.truncf %8 : vector<256x128xf32> to vector<256x128xbf16>
    %c0_6 = arith.constant 0 : index
    %c0_7 = arith.constant 0 : index
    %10 = vector.load %arg7[%c0_6, %c0_7] : memref<256x128xbf16, #tpu.memory_space<vmem>>, vector<256x128xbf16>
    tpu.vector_store %arg7[%c0_6, %c0_7], %9 {strides = array<i32>} : memref<256x128xbf16, #tpu.memory_space<vmem>>, vector<256x128xbf16>,
    return
  }
  func.func @transform_0(%arg0: i32, %arg1: i32) -> (i32, i32) {
    %c0_i32 = arith.constant 0 : i32
    %c0_i32_0 = arith.constant 0 : i32
    return %arg0, %c0_i32 : i32, i32
  }
  func.func @transform_1(%arg0: i32, %arg1: i32) -> (i32, i32) {
    %c0_i32 = arith.constant 0 : i32
    %c0_i32_0 = arith.constant 0 : i32
    %c0_i32_1 = arith.constant 0 : i32
    return %c0_i32, %c0_i32_0 : i32, i32
  }
  func.func @transform_2(%arg0: i32, %arg1: i32) -> (i32, i32) {
    %c0_i32 = arith.constant 0 : i32
    %c0_i32_0 = arith.constant 0 : i32
    %c0_i32_1 = arith.constant 0 : i32
    return %c0_i32, %c0_i32_0 : i32, i32
  }
  func.func @transform_3(%arg0: i32, %arg1: i32) -> (i32, i32) {
    %c0_i32 = arith.constant 0 : i32
    %c0_i32_0 = arith.constant 0 : i32
    return %c0_i32, %arg1 : i32, i32
  }
  func.func @transform_4(%arg0: i32, %arg1: i32) -> (i32, i32) {
    %c0_i32 = arith.constant 0 : i32
    %c0_i32_0 = arith.constant 0 : i32
    return %c0_i32, %arg1 : i32, i32
  }
  func.func @transform_5(%arg0: i32, %arg1: i32) -> (i32, i32) {
    %c0_i32 = arith.constant 0 : i32
    return %arg0, %arg1 : i32, i32
  }
}

</mosaic_0001>

<llo_original>
// kernel: tpu_custom_call.1
$region0: #{tpu_custom_call.1}
  #allocation0 [shape = 'u32[]', space=smem, size = 0x4, offset = 0x4, fixed_abs, tag = 'smem constant byte address 0x4 - core index']
  #allocation1 [shape = 'u32[144,128]{1,0:T(1,128)}', space=vmem, size = 0x12000, scoped, tag = 'internal scratch']
  #allocation2 [shape = 'bf16[256,128]{1,0:T(8,128)(2,1)}', space=vmem, size = 0x10000, scoped, tag = 'scratch operand']
  %s0 = inlined_call_operand.hbm [shape: f32[256,128], index: 0, kind: input, shape index: {}]
  %s1 = inlined_call_operand.vmem [shape: f32[1,128], index: 1, kind: input, shape index: {}]
  %s2 = inlined_call_operand.vmem [shape: f32[1,128], index: 2, kind: input, shape index: {}]
  %s3 = inlined_call_operand.hbm [shape: bf16[128,384], index: 3, kind: input, shape index: {}]
  %s4 = inlined_call_operand.vmem [shape: f32[1,384], index: 4, kind: input, shape index: {}]
  %s5 = inlined_call_operand.hbm [shape: bf16[256,384], index: 5, kind: output, shape index: {}]
  %s6 = sld [smem:[#allocation0]]
  $region65: #{tpu_custom_call.1} parent=0
    _
  %s8 = ssub.s32 1, %s6
  %s9 = scalar_select 0, %s8, %s6
  $region1: #{tpu_custom_call.1} parent=0
    #allocation3 [shape = 'u8[131072]{0}', space=vmem, size = 0x20000, scoped, tag = 'input window, operand 0, single buffered']
    #allocation4 [shape = 's32[2]{0}', space=sflag, size = 0x8, scoped, tag = 'scoped memory for tpu_custom_call.1']
    #allocation5 [shape = 's32[2]{0}', space=sflag, size = 0x8, scoped, tag = 'scoped memory for tpu_custom_call.1']
    #allocation6 [shape = 'u8[65536]{0}', space=vmem, size = 0x10000, scoped, tag = 'input window, operand 3']
    #allocation7 [shape = 's32[2]{0}', space=sflag, size = 0x8, scoped, tag = 'scoped memory for tpu_custom_call.1']
    #allocation8 [shape = 'u8[131072]{0}', space=vmem, size = 0x20000, scoped, tag = 'output window, operand 0']
    %10 = vsyncpa [#allocation4], 0
    %11 = vsyncpa [#allocation7], 0
    %s12 = scalar_lea.sflag [#allocation7], 1
    %13 = vsyncpa %s12, 0
    %14 = vsyncpa [#allocation5], 0
    %s15 = scalar_lea.sflag [#allocation5], 1
    %16 = vsyncpa %s15, 0
    loop: start=0, step=1, limit=5
    $region2: #{tpu_custom_call.1} parent=1 // loop_pre_header
      _
    $region3: #{tpu_custom_call.1} parent=1 // loop_header
      %s18 = sphi 0, %s22
      %p19 = scmp.ge.s32.totalorder %s18, 5
      %s25 = sphi 0, %s37
      %s26 = sphi 0, %s33
      %s27 = sphi 0, %s25
      %s28 = sphi 0, %s26
      %s29 = sphi 0, %s27
      %s30 = sphi 0, %s28
      %s40 = sphi 0, %s42
      %s43 = sphi 0, %s40
      %s44 = sphi 0, %s43
      %s60 = sphi 0, %s44
      %s64 = sphi 0, %s64
      %s66 = sphi 0, %s64
      %s67 = sphi 0, %s66
      %s81 = sphi 0, %s67
      %s85 = sphi 0, %s85
      %s87 = sphi 0, %s85
      %s88 = sphi 0, %s87
      %s102 = sphi 0, %s88
      %s108 = sphi 0, %s110
      %s111 = sphi 0, %s108
      %s112 = sphi 0, %s111
      %s128 = sphi 0, %s112
      %s134 = sphi 0, %s136
      %s137 = sphi 0, %s134
      %s138 = sphi 0, %s137
      %s154 = sphi 0, %s138
      %s162 = sphi 0, %s164
      %s165 = sphi 0, %s162
      %s166 = sphi 0, %s165
      %s182 = sphi 0, %s166
    $region4: #{tpu_custom_call.1} parent=1 // loop_header_branch
      %21 = sbr.rel (%p19) target = $region8
    $region5: #{tpu_custom_call.1} parent=1 // loop_body
      %s23 = ssub.s32 %s18, 1
      %s24 = ssub.s32 %s18, 2
      %s31 = sadd.s32 1, %s26
      %p32 = scmp.ge.s32.totalorder %s31, 3
      %s33 = scalar_select %p32, 0, %s31
      %s34 = sadd.s32 1, %s25
      %s35 = scalar_select %p32, %s34, %s25
      %p36 = scmp.ge.s32.totalorder %s35, 1
      %s37 = scalar_select %p36, 0, %s35
      %s38 = ssub.s32 %s25, %s37
      %p39 = scmp.eq.s32.totalorder %s38, 0
      %s41 = sadd.s32 %s40, 1
      %s42 = scalar_select %p39, %s40, %s41
      %p45 = pneg %p39
      %p46 = scmp.eq.s32.totalorder %s18, 2
      %p47 = por %p45, %p46
      %p48 = scmp.ne.s32.totalorder %s40, %s43
      %p49 = scmp.eq.s32.totalorder %s18, 0
      %p50 = por %p48, %p49
      %p51 = scmp.ne.s32.totalorder %s40, %s43
      %p52 = scmp.eq.s32.totalorder %s23, 2
      %p53 = por %p51, %p52
      %p54 = scmp.ne.s32.totalorder %s43, %s44
      %p55 = scmp.eq.s32.totalorder %s23, 0
      %p56 = por %p54, %p55
      %p57 = scmp.ne.s32.totalorder %s43, %s44
      %p58 = scmp.eq.s32.totalorder %s24, 2
      %p59 = por %p57, %p58
      %p61 = scmp.ne.s32.totalorder %s44, %s60
      %p62 = scmp.eq.s32.totalorder %s24, 0
      %p63 = por %p61, %p62
      %s65 = sadd.s32 %s64, 1
      %p68 = scmp.eq.s32.totalorder %s18, 2
      %p69 = scmp.ne.s32.totalorder %s64, %s66
      %p70 = scmp.eq.s32.totalorder %s18, 0
      %p71 = por %p69, %p70
      %p72 = scmp.ne.s32.totalorder %s64, %s66
      %p73 = scmp.eq.s32.totalorder %s23, 2
      %p74 = por %p72, %p73
      %p75 = scmp.ne.s32.totalorder %s66, %s67
      %p76 = scmp.eq.s32.totalorder %s23, 0
      %p77 = por %p75, %p76
      %p78 = scmp.ne.s32.totalorder %s66, %s67
      %p79 = scmp.eq.s32.totalorder %s24, 2
      %p80 = por %p78, %p79
      %p82 = scmp.ne.s32.totalorder %s67, %s81
      %p83 = scmp.eq.s32.totalorder %s24, 0
      %p84 = por %p82, %p83
      %s86 = sadd.s32 %s85, 1
      %p89 = scmp.eq.s32.totalorder %s18, 2
      %p90 = scmp.ne.s32.totalorder %s85, %s87
      %p91 = scmp.eq.s32.totalorder %s18, 0
      %p92 = por %p90, %p91
      %p93 = scmp.ne.s32.totalorder %s85, %s87
      %p94 = scmp.eq.s32.totalorder %s23, 2
      %p95 = por %p93, %p94
      %p96 = scmp.ne.s32.totalorder %s87, %s88
      %p97 = scmp.eq.s32.totalorder %s23, 0
      %p98 = por %p96, %p97
      %p99 = scmp.ne.s32.totalorder %s87, %s88
      %p100 = scmp.eq.s32.totalorder %s24, 2
      %p101 = por %p99, %p100
      %p103 = scmp.ne.s32.totalorder %s88, %s102
      %p104 = scmp.eq.s32.totalorder %s24, 0
      %p105 = por %p103, %p104
      %s106 = ssub.s32 %s26, %s33
      %p107 = scmp.eq.s32.totalorder %s106, 0
      %s109 = sadd.s32 %s108, 1
      %s110 = scalar_select %p107, %s108, %s109
      %p113 = pneg %p107
      %p114 = scmp.eq.s32.totalorder %s18, 2
      %p115 = por %p113, %p114
      %p116 = scmp.ne.s32.totalorder %s108, %s111
      %p117 = scmp.eq.s32.totalorder %s18, 0
      %p118 = por %p116, %p117
      %p119 = scmp.ne.s32.totalorder %s108, %s111
      %p120 = scmp.eq.s32.totalorder %s23, 2
      %p121 = por %p119, %p120
      %p122 = scmp.ne.s32.totalorder %s111, %s112
      %p123 = scmp.eq.s32.totalorder %s23, 0
      %p124 = por %p122, %p123
      %p125 = scmp.ne.s32.totalorder %s111, %s112
      %p126 = scmp.eq.s32.totalorder %s24, 2
      %p127 = por %p125, %p126
      %p129 = scmp.ne.s32.totalorder %s112, %s128
      %p130 = scmp.eq.s32.totalorder %s24, 0
      %p131 = por %p129, %p130
      %s132 = ssub.s32 %s26, %s33
      %p133 = scmp.eq.s32.totalorder %s132, 0
      %s135 = sadd.s32 %s134, 1
      %s136 = scalar_select %p133, %s134, %s135
      %p139 = pneg %p133
      %p140 = scmp.eq.s32.totalorder %s18, 2
      %p141 = por %p139, %p140
      %p142 = scmp.ne.s32.totalorder %s134, %s137
      %p143 = scmp.eq.s32.totalorder %s18, 0
      %p144 = por %p142, %p143
      %p145 = scmp.ne.s32.totalorder %s134, %s137
      %p146 = scmp.eq.s32.totalorder %s23, 2
      %p147 = por %p145, %p146
      %p148 = scmp.ne.s32.totalorder %s137, %s138
      %p149 = scmp.eq.s32.totalorder %s23, 0
      %p150 = por %p148, %p149
      %p151 = scmp.ne.s32.totalorder %s137, %s138
      %p152 = scmp.eq.s32.totalorder %s24, 2
      %p153 = por %p151, %p152
      %p155 = scmp.ne.s32.totalorder %s138, %s154
      %p156 = scmp.eq.s32.totalorder %s24, 0
      %p157 = por %p155, %p156
      %s158 = ssub.s32 %s25, %s37
      %s159 = ssub.s32 %s26, %s33
      %s160 = sor.u32 %s158, %s159
      %p161 = scmp.eq.s32.totalorder %s160, 0
      %s163 = sadd.s32 %s162, 1
      %s164 = scalar_select %p161, %s162, %s163
      %p167 = pneg %p161
      %p168 = scmp.eq.s32.totalorder %s18, 2
      %p169 = por %p167, %p168
      %p170 = scmp.ne.s32.totalorder %s162, %s165
      %p171 = scmp.eq.s32.totalorder %s18, 0
      %p172 = por %p170, %p171
      %p173 = scmp.ne.s32.totalorder %s162, %s165
      %p174 = scmp.eq.s32.totalorder %s23, 2
      %p175 = por %p173, %p174
      %p176 = scmp.ne.s32.totalorder %s165, %s166
      %p177 = scmp.eq.s32.totalorder %s23, 0
      %p178 = por %p176, %p177
      %p179 = scmp.ne.s32.totalorder %s165, %s166
      %p180 = scmp.eq.s32.totalorder %s24, 2
      %p181 = por %p179, %p180
      %p183 = scmp.ne.s32.totalorder %s166, %s182
      %p184 = scmp.eq.s32.totalorder %s24, 0
      %p185 = por %p183, %p184
      %p186 = scmp.le.s32.totalorder 1, %s18
      %p187 = scmp.lt.s32.totalorder %s18, 4
      %p188 = pnand %p186, %p187
      %p189 = pneg %p188
      // Predicated region
      $region9: #{tpu_custom_call.1} parent=5 // pred_check
        _
      $region10: #{tpu_custom_call.1} parent=5 // pred_check_branch
        %191 = sbr.rel (%p188) target = $region12
      $region11: #{tpu_custom_call.1} parent=5 // pred_region
        %s192 = ssub.s32 %s18, 1
        // Predicated region
        $region13: #{tpu_custom_call.1} parent=11 // pred_check
          %p193 = pneg %p56
        $region14: #{tpu_custom_call.1} parent=11 // pred_check_branch
          %195 = sbr.rel (%p193) target = $region16
        $region15: #{tpu_custom_call.1} parent=11 // pred_region
          %s196 = smul.u32 32, %s27
          %s198 = ssub.s32 4096, 4096
          %199 = vsyncadd [#allocation4], %s198
          %s200 = smul.addr %s196, 128
          %s201 = scalar_lea.hbm %s0, %s200
          %s202 = sshll.u32 [#allocation3], 4
          %s203 = int_to_ptr.vmem [resolvable:$true] %s202
          %208 = dma.hbm_to_vmem [thread:$0]  %s201, 4096, %s203, [#allocation4], 128, 128, 8
        $region16: #{tpu_custom_call.1} parent=11 // pred_fallthru
          _
        // Predicated region
        $region17: #{tpu_custom_call.1} parent=11 // pred_check
          %p209 = pneg %p77
        $region18: #{tpu_custom_call.1} parent=11 // pred_check_branch
          %211 = sbr.rel (%p209) target = $region20
        $region19: #{tpu_custom_call.1} parent=11 // pred_region
          _
        $region20: #{tpu_custom_call.1} parent=11 // pred_fallthru
          _
        // Predicated region
        $region21: #{tpu_custom_call.1} parent=11 // pred_check
          %p212 = pneg %p98
        $region22: #{tpu_custom_call.1} parent=11 // pred_check_branch
          %214 = sbr.rel (%p212) target = $region24
        $region23: #{tpu_custom_call.1} parent=11 // pred_region
          _
        $region24: #{tpu_custom_call.1} parent=11 // pred_fallthru
          _
      $region12: #{tpu_custom_call.1} parent=5 // pred_fallthru
        _
      %p215 = scmp.lt.s32.totalorder %s18, 3
      // Predicated region
      $region25: #{tpu_custom_call.1} parent=5 // pred_check
        %p216 = pneg %p215
      $region26: #{tpu_custom_call.1} parent=5 // pred_check_branch
        %218 = sbr.rel (%p216) target = $region28
      $region27: #{tpu_custom_call.1} parent=5 // pred_region
        // Predicated region
        $region29: #{tpu_custom_call.1} parent=27 // pred_check
          %p219 = pneg %p118
        $region30: #{tpu_custom_call.1} parent=27 // pred_check_branch
          %221 = sbr.rel (%p219) target = $region32
        $region31: #{tpu_custom_call.1} parent=27 // pred_region
          %s222 = sand.u32 %s108, 1
          %s223 = scalar_lea.sflag [#allocation7], %s222
          %s224 = sand.u32 %s108, 1
          %s225 = smul.addr %s224, 64
          %s226 = scalar_lea.vmem [#allocation6], %s225
          %s228 = ssub.s32 1024, 1024
          %229 = vsyncadd %s223, %s228
          %s230 = smul.addr %s26, 64
          %s231 = scalar_lea.hbm %s3, %s230
          %s232 = sshll.u32 %s226, 4
          %s233 = int_to_ptr.vmem [resolvable:$true] %s232
          %238 = dma.hbm_to_vmem [thread:$0]  %s231, 1024, %s233, %s223, 192, 64, 4
        $region32: #{tpu_custom_call.1} parent=27 // pred_fallthru
          _
        // Predicated region
        $region33: #{tpu_custom_call.1} parent=27 // pred_check
          %p239 = pneg %p144
        $region34: #{tpu_custom_call.1} parent=27 // pred_check_branch
          %241 = sbr.rel (%p239) target = $region36
        $region35: #{tpu_custom_call.1} parent=27 // pred_region
          %p242 = scmp.lt.s32.totalorder %s26, 2
          %s243 = scalar_select %p242, %s26, 2
          %s244 = scalar_lea.vmem %s4, %s243
        $region36: #{tpu_custom_call.1} parent=27 // pred_fallthru
          _
      $region28: #{tpu_custom_call.1} parent=5 // pred_fallthru
        _
      %p245 = scmp.le.s32.totalorder 1, %s18
      %p246 = scmp.lt.s32.totalorder %s18, 4
      %p247 = pnand %p245, %p246
      %p248 = pneg %p247
      // Predicated region
      $region37: #{tpu_custom_call.1} parent=5 // pred_check
        _
      $region38: #{tpu_custom_call.1} parent=5 // pred_check_branch
        %250 = sbr.rel (%p247) target = $region40
      $region39: #{tpu_custom_call.1} parent=5 // pred_region
        %s251 = ssub.s32 %s18, 1
        // Predicated region
        $region41: #{tpu_custom_call.1} parent=39 // pred_check
          %p252 = pneg %p56
        $region42: #{tpu_custom_call.1} parent=39 // pred_check_branch
          %254 = sbr.rel (%p252) target = $region44
        $region43: #{tpu_custom_call.1} parent=39 // pred_region
          %255 = dma.done [#allocation4], 4096
        $region44: #{tpu_custom_call.1} parent=39 // pred_fallthru
          _
        %s256 = sand.u32 %s111, 1
        %s257 = scalar_lea.sflag [#allocation7], %s256
        %s258 = sand.u32 %s111, 1
        %s259 = smul.addr %s258, 64
        %s260 = scalar_lea.vmem [#allocation6], %s259
        // Predicated region
        $region45: #{tpu_custom_call.1} parent=39 // pred_check
          %p261 = pneg %p124
        $region46: #{tpu_custom_call.1} parent=39 // pred_check_branch
          %263 = sbr.rel (%p261) target = $region48
        $region47: #{tpu_custom_call.1} parent=39 // pred_region
          %264 = dma.done %s257, 1024
        $region48: #{tpu_custom_call.1} parent=39 // pred_fallthru
          _
        %p265 = pneg %p56
        %p266 = pneg %p53
        %p267 = pneg %p77
        %p268 = pneg %p74
        %p269 = pneg %p98
        %p270 = pneg %p95
        %s271 = sand.u32 %s111, 1
        %s272 = scalar_lea.sflag [#allocation7], %s271
        %s273 = sand.u32 %s111, 1
        %s274 = smul.addr %s273, 64
        %s275 = scalar_lea.vmem [#allocation6], %s274
        %p276 = pneg %p124
        %p277 = pneg %p121
        %p278 = scmp.lt.s32.totalorder %s28, 2
        %s279 = scalar_select %p278, %s28, 2
        %s280 = scalar_lea.vmem %s4, %s279
        %p281 = pneg %p150
        %p282 = pneg %p147
        %p283 = pneg %p178
        %p284 = pneg %p175
        %s285 = sand.u32 %s165, 1
        %s286 = scalar_lea.sflag [#allocation5], %s285
        %s287 = sand.u32 %s165, 1
        %s288 = smul.addr %s287, 128
        %s289 = scalar_lea.vmem [#allocation8], %s288
        %s290 = smul.u32 32, %s27
        %p291 = scmp.lt.s32.totalorder %s28, 2
        %s292 = scalar_select %p291, %s28, 2
        %s293 = scalar_lea.vmem %s4, %s292
        %s294 = smul.u32 32, %s27
        %p296 = scmp.eq.s32.totalorder %s28, 0
        // Predicated region
        $region49: #{tpu_custom_call.1} parent=39 // pred_check
          %p297 = pneg %p296
        $region50: #{tpu_custom_call.1} parent=39 // pred_check_branch
          %299 = sbr.rel (%p297) target = $region52
        $region51: #{tpu_custom_call.1} parent=39 // pred_region
          %v300 = vld [vmem:[#allocation3] sm:$0xff]
          %v301 = vld [vmem:[#allocation3 + $0x8] sm:$0xff]
          %v302 = vld [vmem:[#allocation3 + $0x10] sm:$0xff]
          %v303 = vld [vmem:[#allocation3 + $0x18] sm:$0xff]
          %v304 = vld [vmem:[#allocation3 + $0x20] sm:$0xff]
          %v305 = vld [vmem:[#allocation3 + $0x28] sm:$0xff]
          %v306 = vld [vmem:[#allocation3 + $0x30] sm:$0xff]
          %v307 = vld [vmem:[#allocation3 + $0x38] sm:$0xff]
          %v308 = vld [vmem:[#allocation3 + $0x40] sm:$0xff]
          %v309 = vld [vmem:[#allocation3 + $0x48] sm:$0xff]
          %v310 = vld [vmem:[#allocation3 + $0x50] sm:$0xff]
          %v311 = vld [vmem:[#allocation3 + $0x58] sm:$0xff]
          %v312 = vld [vmem:[#allocation3 + $0x60] sm:$0xff]
          %v313 = vld [vmem:[#allocation3 + $0x68] sm:$0xff]
          %v314 = vld [vmem:[#allocation3 + $0x70] sm:$0xff]
          %v315 = vld [vmem:[#allocation3 + $0x78] sm:$0xff]
          %v316 = vld [vmem:[#allocation3 + $0x80] sm:$0xff]
          %v317 = vld [vmem:[#allocation3 + $0x88] sm:$0xff]
          %v318 = vld [vmem:[#allocation3 + $0x90] sm:$0xff]
          %v319 = vld [vmem:[#allocation3 + $0x98] sm:$0xff]
          %v320 = vld [vmem:[#allocation3 + $0xa0] sm:$0xff]
          %v321 = vld [vmem:[#allocation3 + $0xa8] sm:$0xff]
          %v322 = vld [vmem:[#allocation3 + $0xb0] sm:$0xff]
          %v323 = vld [vmem:[#allocation3 + $0xb8] sm:$0xff]
          %v324 = vld [vmem:[#allocation3 + $0xc0] sm:$0xff]
          %v325 = vld [vmem:[#allocation3 + $0xc8] sm:$0xff]
          %v326 = vld [vmem:[#allocation3 + $0xd0] sm:$0xff]
          %v327 = vld [vmem:[#allocation3 + $0xd8] sm:$0xff]
          %v328 = vld [vmem:[#allocation3 + $0xe0] sm:$0xff]
          %v329 = vld [vmem:[#allocation3 + $0xe8] sm:$0xff]
          %v330 = vld [vmem:[#allocation3 + $0xf0] sm:$0xff]
          %v331 = vld [vmem:[#allocation3 + $0xf8] sm:$0xff]
          %332 = vadd.xlane.f32.xlu0 %v300
          %v333 = vpop.xlane.xlu0 %332
          %334 = vadd.xlane.f32.xlu0 %v301
          %v335 = vpop.xlane.xlu0 %334
          %336 = vadd.xlane.f32.xlu0 %v302
          %v337 = vpop.xlane.xlu0 %336
          %338 = vadd.xlane.f32.xlu0 %v303
          %v339 = vpop.xlane.xlu0 %338
          %340 = vadd.xlane.f32.xlu0 %v304
          %v341 = vpop.xlane.xlu0 %340
          %342 = vadd.xlane.f32.xlu0 %v305
          %v343 = vpop.xlane.xlu0 %342
          %344 = vadd.xlane.f32.xlu0 %v306
          %v345 = vpop.xlane.xlu0 %344
          %346 = vadd.xlane.f32.xlu0 %v307
          %v347 = vpop.xlane.xlu0 %346
          %348 = vadd.xlane.f32.xlu0 %v308
          %v349 = vpop.xlane.xlu0 %348
          %350 = vadd.xlane.f32.xlu0 %v309
          %v351 = vpop.xlane.xlu0 %350
          %352 = vadd.xlane.f32.xlu0 %v310
          %v353 = vpop.xlane.xlu0 %352
          %354 = vadd.xlane.f32.xlu0 %v311
          %v355 = vpop.xlane.xlu0 %354
          %356 = vadd.xlane.f32.xlu0 %v312
          %v357 = vpop.xlane.xlu0 %356
          %358 = vadd.xlane.f32.xlu0 %v313
          %v359 = vpop.xlane.xlu0 %358
          %360 = vadd.xlane.f32.xlu0 %v314
          %v361 = vpop.xlane.xlu0 %360
          %362 = vadd.xlane.f32.xlu0 %v315
          %v363 = vpop.xlane.xlu0 %362
          %364 = vadd.xlane.f32.xlu0 %v316
          %v365 = vpop.xlane.xlu0 %364
          %366 = vadd.xlane.f32.xlu0 %v317
          %v367 = vpop.xlane.xlu0 %366
          %368 = vadd.xlane.f32.xlu0 %v318
          %v369 = vpop.xlane.xlu0 %368
          %370 = vadd.xlane.f32.xlu0 %v319
          %v371 = vpop.xlane.xlu0 %370
          %372 = vadd.xlane.f32.xlu0 %v320
          %v373 = vpop.xlane.xlu0 %372
          %374 = vadd.xlane.f32.xlu0 %v321
          %v375 = vpop.xlane.xlu0 %374
          %376 = vadd.xlane.f32.xlu0 %v322
          %v377 = vpop.xlane.xlu0 %376
          %378 = vadd.xlane.f32.xlu0 %v323
          %v379 = vpop.xlane.xlu0 %378
          %380 = vadd.xlane.f32.xlu0 %v324
          %v381 = vpop.xlane.xlu0 %380
          %382 = vadd.xlane.f32.xlu0 %v325
          %v383 = vpop.xlane.xlu0 %382
          %384 = vadd.xlane.f32.xlu0 %v326
          %v385 = vpop.xlane.xlu0 %384
          %386 = vadd.xlane.f32.xlu0 %v327
          %v387 = vpop.xlane.xlu0 %386
          %388 = vadd.xlane.f32.xlu0 %v328
          %v389 = vpop.xlane.xlu0 %388
          %390 = vadd.xlane.f32.xlu0 %v329
          %v391 = vpop.xlane.xlu0 %390
          %392 = vadd.xlane.f32.xlu0 %v330
          %v393 = vpop.xlane.xlu0 %392
          %394 = vadd.xlane.f32.xlu0 %v331
          %v395 = vpop.xlane.xlu0 %394
          %v396 = vrcp.pop 128.0
          %v397 = vmul.f32 %v333, %v396
          %v398 = vmul.f32 %v335, %v396
          %v399 = vmul.f32 %v337, %v396
          %v400 = vmul.f32 %v339, %v396
          %v401 = vmul.f32 %v341, %v396
          %v402 = vmul.f32 %v343, %v396
          %v403 = vmul.f32 %v345, %v396
          %v404 = vmul.f32 %v347, %v396
          %v405 = vmul.f32 %v349, %v396
          %v406 = vmul.f32 %v351, %v396
          %v407 = vmul.f32 %v353, %v396
          %v408 = vmul.f32 %v355, %v396
          %v409 = vmul.f32 %v357, %v396
          %v410 = vmul.f32 %v359, %v396
          %v411 = vmul.f32 %v361, %v396
          %v412 = vmul.f32 %v363, %v396
          %v413 = vmul.f32 %v365, %v396
          %v414 = vmul.f32 %v367, %v396
          %v415 = vmul.f32 %v369, %v396
          %v416 = vmul.f32 %v371, %v396
          %v417 = vmul.f32 %v373, %v396
          %v418 = vmul.f32 %v375, %v396
          %v419 = vmul.f32 %v377, %v396
          %v420 = vmul.f32 %v379, %v396
          %v421 = vmul.f32 %v381, %v396
          %v422 = vmul.f32 %v383, %v396
          %v423 = vmul.f32 %v385, %v396
          %v424 = vmul.f32 %v387, %v396
          %v425 = vmul.f32 %v389, %v396
          %v426 = vmul.f32 %v391, %v396
          %v427 = vmul.f32 %v393, %v396
          %v428 = vmul.f32 %v395, %v396
          %v429 = vsub.f32 %v300, %v397
          %v430 = vsub.f32 %v301, %v398
          %v431 = vsub.f32 %v302, %v399
          %v432 = vsub.f32 %v303, %v400
          %v433 = vsub.f32 %v304, %v401
          %v434 = vsub.f32 %v305, %v402
          %v435 = vsub.f32 %v306, %v403
          %v436 = vsub.f32 %v307, %v404
          %v437 = vsub.f32 %v308, %v405
          %v438 = vsub.f32 %v309, %v406
          %v439 = vsub.f32 %v310, %v407
          %v440 = vsub.f32 %v311, %v408
          %v441 = vsub.f32 %v312, %v409
          %v442 = vsub.f32 %v313, %v410
          %v443 = vsub.f32 %v314, %v411
          %v444 = vsub.f32 %v315, %v412
          %v445 = vsub.f32 %v316, %v413
          %v446 = vsub.f32 %v317, %v414
          %v447 = vsub.f32 %v318, %v415
          %v448 = vsub.f32 %v319, %v416
          %v449 = vsub.f32 %v320, %v417
          %v450 = vsub.f32 %v321, %v418
          %v451 = vsub.f32 %v322, %v419
          %v452 = vsub.f32 %v323, %v420
          %v453 = vsub.f32 %v324, %v421
          %v454 = vsub.f32 %v325, %v422
          %v455 = vsub.f32 %v326, %v423
          %v456 = vsub.f32 %v327, %v424
          %v457 = vsub.f32 %v328, %v425
          %v458 = vsub.f32 %v329, %v426
          %v459 = vsub.f32 %v330, %v427
          %v460 = vsub.f32 %v331, %v428
          %v461 = vmul.f32 %v429, %v429
          %v462 = vmul.f32 %v430, %v430
          %v463 = vmul.f32 %v431, %v431
          %v464 = vmul.f32 %v432, %v432
          %v465 = vmul.f32 %v433, %v433
          %v466 = vmul.f32 %v434, %v434
          %v467 = vmul.f32 %v435, %v435
          %v468 = vmul.f32 %v436, %v436
          %v469 = vmul.f32 %v437, %v437
          %v470 = vmul.f32 %v438, %v438
          %v471 = vmul.f32 %v439, %v439
          %v472 = vmul.f32 %v440, %v440
          %v473 = vmul.f32 %v441, %v441
          %v474 = vmul.f32 %v442, %v442
          %v475 = vmul.f32 %v443, %v443
          %v476 = vmul.f32 %v444, %v444
          %v477 = vmul.f32 %v445, %v445
          %v478 = vmul.f32 %v446, %v446
          %v479 = vmul.f32 %v447, %v447
          %v480 = vmul.f32 %v448, %v448
          %v481 = vmul.f32 %v449, %v449
          %v482 = vmul.f32 %v450, %v450
          %v483 = vmul.f32 %v451, %v451
          %v484 = vmul.f32 %v452, %v452
          %v485 = vmul.f32 %v453, %v453
          %v486 = vmul.f32 %v454, %v454
          %v487 = vmul.f32 %v455, %v455
          %v488 = vmul.f32 %v456, %v456
          %v489 = vmul.f32 %v457, %v457
          %v490 = vmul.f32 %v458, %v458
          %v491 = vmul.f32 %v459, %v459
          %v492 = vmul.f32 %v460, %v460
          %493 = vadd.xlane.f32.xlu0 %v461
          %v494 = vpop.xlane.xlu0 %493
          %495 = vadd.xlane.f32.xlu0 %v462
          %v496 = vpop.xlane.xlu0 %495
          %497 = vadd.xlane.f32.xlu0 %v463
          %v498 = vpop.xlane.xlu0 %497
          %499 = vadd.xlane.f32.xlu0 %v464
          %v500 = vpop.xlane.xlu0 %499
          %501 = vadd.xlane.f32.xlu0 %v465
          %v502 = vpop.xlane.xlu0 %501
          %503 = vadd.xlane.f32.xlu0 %v466
          %v504 = vpop.xlane.xlu0 %503
          %505 = vadd.xlane.f32.xlu0 %v467
          %v506 = vpop.xlane.xlu0 %505
          %507 = vadd.xlane.f32.xlu0 %v468
          %v508 = vpop.xlane.xlu0 %507
          %509 = vadd.xlane.f32.xlu0 %v469
          %v510 = vpop.xlane.xlu0 %509
          %511 = vadd.xlane.f32.xlu0 %v470
          %v512 = vpop.xlane.xlu0 %511
          %513 = vadd.xlane.f32.xlu0 %v471
          %v514 = vpop.xlane.xlu0 %513
          %515 = vadd.xlane.f32.xlu0 %v472
          %v516 = vpop.xlane.xlu0 %515
          %517 = vadd.xlane.f32.xlu0 %v473
          %v518 = vpop.xlane.xlu0 %517
          %519 = vadd.xlane.f32.xlu0 %v474
          %v520 = vpop.xlane.xlu0 %519
          %521 = vadd.xlane.f32.xlu0 %v475
          %v522 = vpop.xlane.xlu0 %521
          %523 = vadd.xlane.f32.xlu0 %v476
          %v524 = vpop.xlane.xlu0 %523
          %525 = vadd.xlane.f32.xlu0 %v477
          %v526 = vpop.xlane.xlu0 %525
          %527 = vadd.xlane.f32.xlu0 %v478
          %v528 = vpop.xlane.xlu0 %527
          %529 = vadd.xlane.f32.xlu0 %v479
          %v530 = vpop.xlane.xlu0 %529
          %531 = vadd.xlane.f32.xlu0 %v480
          %v532 = vpop.xlane.xlu0 %531
          %533 = vadd.xlane.f32.xlu0 %v481
          %v534 = vpop.xlane.xlu0 %533
          %535 = vadd.xlane.f32.xlu0 %v482
          %v536 = vpop.xlane.xlu0 %535
          %537 = vadd.xlane.f32.xlu0 %v483
          %v538 = vpop.xlane.xlu0 %537
          %539 = vadd.xlane.f32.xlu0 %v484
          %v540 = vpop.xlane.xlu0 %539
          %541 = vadd.xlane.f32.xlu0 %v485
          %v542 = vpop.xlane.xlu0 %541
          %543 = vadd.xlane.f32.xlu0 %v486
          %v544 = vpop.xlane.xlu0 %543
          %545 = vadd.xlane.f32.xlu0 %v487
          %v546 = vpop.xlane.xlu0 %545
          %547 = vadd.xlane.f32.xlu0 %v488
          %v548 = vpop.xlane.xlu0 %547
          %549 = vadd.xlane.f32.xlu0 %v489
          %v550 = vpop.xlane.xlu0 %549
          %551 = vadd.xlane.f32.xlu0 %v490
          %v552 = vpop.xlane.xlu0 %551
          %553 = vadd.xlane.f32.xlu0 %v491
          %v554 = vpop.xlane.xlu0 %553
          %555 = vadd.xlane.f32.xlu0 %v492
          %v556 = vpop.xlane.xlu0 %555
          %v557 = vmul.f32 %v494, %v396
          %v558 = vmul.f32 %v496, %v396
          %v559 = vmul.f32 %v498, %v396
          %v560 = vmul.f32 %v500, %v396
          %v561 = vmul.f32 %v502, %v396
          %v562 = vmul.f32 %v504, %v396
          %v563 = vmul.f32 %v506, %v396
          %v564 = vmul.f32 %v508, %v396
          %v565 = vmul.f32 %v510, %v396
          %v566 = vmul.f32 %v512, %v396
          %v567 = vmul.f32 %v514, %v396
          %v568 = vmul.f32 %v516, %v396
          %v569 = vmul.f32 %v518, %v396
          %v570 = vmul.f32 %v520, %v396
          %v571 = vmul.f32 %v522, %v396
          %v572 = vmul.f32 %v524, %v396
          %v573 = vmul.f32 %v526, %v396
          %v574 = vmul.f32 %v528, %v396
          %v575 = vmul.f32 %v530, %v396
          %v576 = vmul.f32 %v532, %v396
          %v577 = vmul.f32 %v534, %v396
          %v578 = vmul.f32 %v536, %v396
          %v579 = vmul.f32 %v538, %v396
          %v580 = vmul.f32 %v540, %v396
          %v581 = vmul.f32 %v542, %v396
          %v582 = vmul.f32 %v544, %v396
          %v583 = vmul.f32 %v546, %v396
          %v584 = vmul.f32 %v548, %v396
          %v585 = vmul.f32 %v550, %v396
          %v586 = vmul.f32 %v552, %v396
          %v587 = vmul.f32 %v554, %v396
          %v588 = vmul.f32 %v556, %v396
          %v589 = vadd.f32 %v557, 1e-05
          %v590 = vadd.f32 %v558, 1e-05
          %v591 = vadd.f32 %v559, 1e-05
          %v592 = vadd.f32 %v560, 1e-05
          %v593 = vadd.f32 %v561, 1e-05
          %v594 = vadd.f32 %v562, 1e-05
          %v595 = vadd.f32 %v563, 1e-05
          %v596 = vadd.f32 %v564, 1e-05
          %v597 = vadd.f32 %v565, 1e-05
          %v598 = vadd.f32 %v566, 1e-05
          %v599 = vadd.f32 %v567, 1e-05
          %v600 = vadd.f32 %v568, 1e-05
          %v601 = vadd.f32 %v569, 1e-05
          %v602 = vadd.f32 %v570, 1e-05
          %v603 = vadd.f32 %v571, 1e-05
          %v604 = vadd.f32 %v572, 1e-05
          %v605 = vadd.f32 %v573, 1e-05
          %v606 = vadd.f32 %v574, 1e-05
          %v607 = vadd.f32 %v575, 1e-05
          %v608 = vadd.f32 %v576, 1e-05
          %v609 = vadd.f32 %v577, 1e-05
          %v610 = vadd.f32 %v578, 1e-05
          %v611 = vadd.f32 %v579, 1e-05
          %v612 = vadd.f32 %v580, 1e-05
          %v613 = vadd.f32 %v581, 1e-05
          %v614 = vadd.f32 %v582, 1e-05
          %v615 = vadd.f32 %v583, 1e-05
          %v616 = vadd.f32 %v584, 1e-05
          %v617 = vadd.f32 %v585, 1e-05
          %v618 = vadd.f32 %v586, 1e-05
          %v619 = vadd.f32 %v587, 1e-05
          %v620 = vadd.f32 %v588, 1e-05
          %v621 = vrsqrt.pop %v589
          %v622 = vrsqrt.pop %v590
          %v623 = vrsqrt.pop %v591
          %v624 = vrsqrt.pop %v592
          %v625 = vrsqrt.pop %v593
          %v626 = vrsqrt.pop %v594
          %v627 = vrsqrt.pop %v595
          %v628 = vrsqrt.pop %v596
          %v629 = vrsqrt.pop %v597
          %v630 = vrsqrt.pop %v598
          %v631 = vrsqrt.pop %v599
          %v632 = vrsqrt.pop %v600
          %v633 = vrsqrt.pop %v601
          %v634 = vrsqrt.pop %v602
          %v635 = vrsqrt.pop %v603
          %v636 = vrsqrt.pop %v604
          %v637 = vrsqrt.pop %v605
          %v638 = vrsqrt.pop %v606
          %v639 = vrsqrt.pop %v607
          %v640 = vrsqrt.pop %v608
          %v641 = vrsqrt.pop %v609
          %v642 = vrsqrt.pop %v610
          %v643 = vrsqrt.pop %v611
          %v644 = vrsqrt.pop %v612
          %v645 = vrsqrt.pop %v613
          %v646 = vrsqrt.pop %v614
          %v647 = vrsqrt.pop %v615
          %v648 = vrsqrt.pop %v616
          %v649 = vrsqrt.pop %v617
          %v650 = vrsqrt.pop %v618
          %v651 = vrsqrt.pop %v619
          %v652 = vrsqrt.pop %v620
          %v653 = vmul.f32 %v429, %v621
          %v654 = vmul.f32 %v430, %v622
          %v655 = vmul.f32 %v431, %v623
          %v656 = vmul.f32 %v432, %v624
          %v657 = vmul.f32 %v433, %v625
          %v658 = vmul.f32 %v434, %v626
          %v659 = vmul.f32 %v435, %v627
          %v660 = vmul.f32 %v436, %v628
          %v661 = vmul.f32 %v437, %v629
          %v662 = vmul.f32 %v438, %v630
          %v663 = vmul.f32 %v439, %v631
          %v664 = vmul.f32 %v440, %v632
          %v665 = vmul.f32 %v441, %v633
          %v666 = vmul.f32 %v442, %v634
          %v667 = vmul.f32 %v443, %v635
          %v668 = vmul.f32 %v444, %v636
          %v669 = vmul.f32 %v445, %v637
          %v670 = vmul.f32 %v446, %v638
          %v671 = vmul.f32 %v447, %v639
          %v672 = vmul.f32 %v448, %v640
          %v673 = vmul.f32 %v449, %v641
          %v674 = vmul.f32 %v450, %v642
          %v675 = vmul.f32 %v451, %v643
          %v676 = vmul.f32 %v452, %v644
          %v677 = vmul.f32 %v453, %v645
          %v678 = vmul.f32 %v454, %v646
          %v679 = vmul.f32 %v455, %v647
          %v680 = vmul.f32 %v456, %v648
          %v681 = vmul.f32 %v457, %v649
          %v682 = vmul.f32 %v458, %v650
          %v683 = vmul.f32 %v459, %v651
          %v684 = vmul.f32 %v460, %v652
          %v685 = vld [vmem:[%s1] sm:$0x1]
          %v687 = vlaneseq
          %v688 = vshrl.u32 %v687, 7
          %v689 = vsub.s32 0, %v688
          %v690 = vrot.slane %v685, %v689
          %v692 = vmul.f32 %v653, %v690
          %v693 = vmul.f32 %v654, %v690
          %v694 = vmul.f32 %v655, %v690
          %v695 = vmul.f32 %v656, %v690
          %v696 = vmul.f32 %v657, %v690
          %v697 = vmul.f32 %v658, %v690
          %v698 = vmul.f32 %v659, %v690
          %v699 = vmul.f32 %v660, %v690
          %v700 = vmul.f32 %v661, %v690
          %v701 = vmul.f32 %v662, %v690
          %v702 = vmul.f32 %v663, %v690
          %v703 = vmul.f32 %v664, %v690
          %v704 = vmul.f32 %v665, %v690
          %v705 = vmul.f32 %v666, %v690
          %v706 = vmul.f32 %v667, %v690
          %v707 = vmul.f32 %v668, %v690
          %v708 = vmul.f32 %v669, %v690
          %v709 = vmul.f32 %v670, %v690
          %v710 = vmul.f32 %v671, %v690
          %v711 = vmul.f32 %v672, %v690
          %v712 = vmul.f32 %v673, %v690
          %v713 = vmul.f32 %v674, %v690
          %v714 = vmul.f32 %v675, %v690
          %v715 = vmul.f32 %v676, %v690
          %v716 = vmul.f32 %v677, %v690
          %v717 = vmul.f32 %v678, %v690
          %v718 = vmul.f32 %v679, %v690
          %v719 = vmul.f32 %v680, %v690
          %v720 = vmul.f32 %v681, %v690
          %v721 = vmul.f32 %v682, %v690
          %v722 = vmul.f32 %v683, %v690
          %v723 = vmul.f32 %v684, %v690
          %v724 = vld [vmem:[%s2] sm:$0x1]
          %v726 = vlaneseq
          %v727 = vshrl.u32 %v726, 7
          %v728 = vsub.s32 0, %v727
          %v729 = vrot.slane %v724, %v728
          %v731 = vadd.f32 %v692, %v729
          %v732 = vadd.f32 %v693, %v729
          %v733 = vadd.f32 %v694, %v729
          %v734 = vadd.f32 %v695, %v729
          %v735 = vadd.f32 %v696, %v729
          %v736 = vadd.f32 %v697, %v729
          %v737 = vadd.f32 %v698, %v729
          %v738 = vadd.f32 %v699, %v729
          %v739 = vadd.f32 %v700, %v729
          %v740 = vadd.f32 %v701, %v729
          %v741 = vadd.f32 %v702, %v729
          %v742 = vadd.f32 %v703, %v729
          %v743 = vadd.f32 %v704, %v729
          %v744 = vadd.f32 %v705, %v729
          %v745 = vadd.f32 %v706, %v729
          %v746 = vadd.f32 %v707, %v729
          %v747 = vadd.f32 %v708, %v729
          %v748 = vadd.f32 %v709, %v729
          %v749 = vadd.f32 %v710, %v729
          %v750 = vadd.f32 %v711, %v729
          %v751 = vadd.f32 %v712, %v729
          %v752 = vadd.f32 %v713, %v729
          %v753 = vadd.f32 %v714, %v729
          %v754 = vadd.f32 %v715, %v729
          %v755 = vadd.f32 %v716, %v729
          %v756 = vadd.f32 %v717, %v729
          %v757 = vadd.f32 %v718, %v729
          %v758 = vadd.f32 %v719, %v729
          %v759 = vadd.f32 %v720, %v729
          %v760 = vadd.f32 %v721, %v729
          %v761 = vadd.f32 %v722, %v729
          %v762 = vadd.f32 %v723, %v729
          %v763 = vpack.c.bf16 %v732, %v731
          %v764 = vpack.c.bf16 %v734, %v733
          %v765 = vpack.c.bf16 %v736, %v735
          %v766 = vpack.c.bf16 %v738, %v737
          %v767 = vpack.c.bf16 %v740, %v739
          %v768 = vpack.c.bf16 %v742, %v741
          %v769 = vpack.c.bf16 %v744, %v743
          %v770 = vpack.c.bf16 %v746, %v745
          %v771 = vpack.c.bf16 %v748, %v747
          %v772 = vpack.c.bf16 %v750, %v749
          %v773 = vpack.c.bf16 %v752, %v751
          %v774 = vpack.c.bf16 %v754, %v753
          %v775 = vpack.c.bf16 %v756, %v755
          %v776 = vpack.c.bf16 %v758, %v757
          %v777 = vpack.c.bf16 %v760, %v759
          %v778 = vpack.c.bf16 %v762, %v761
          %v795 = vunpack.c.l.b16 %v763
          %v796 = vunpack.c.h.b16 %v763
          %v797 = vunpack.c.l.b16 %v764
          %v798 = vunpack.c.h.b16 %v764
          %v799 = vunpack.c.l.b16 %v765
          %v800 = vunpack.c.h.b16 %v765
          %v801 = vunpack.c.l.b16 %v766
          %v802 = vunpack.c.h.b16 %v766
          %v803 = vunpack.c.l.b16 %v767
          %v804 = vunpack.c.h.b16 %v767
          %v805 = vunpack.c.l.b16 %v768
          %v806 = vunpack.c.h.b16 %v768
          %v807 = vunpack.c.l.b16 %v769
          %v808 = vunpack.c.h.b16 %v769
          %v809 = vunpack.c.l.b16 %v770
          %v810 = vunpack.c.h.b16 %v770
          %v811 = vunpack.c.l.b16 %v771
          %v812 = vunpack.c.h.b16 %v771
          %v813 = vunpack.c.l.b16 %v772
          %v814 = vunpack.c.h.b16 %v772
          %v815 = vunpack.c.l.b16 %v773
          %v816 = vunpack.c.h.b16 %v773
          %v817 = vunpack.c.l.b16 %v774
          %v818 = vunpack.c.h.b16 %v774
          %v819 = vunpack.c.l.b16 %v775
          %v820 = vunpack.c.h.b16 %v775
          %v821 = vunpack.c.l.b16 %v776
          %v822 = vunpack.c.h.b16 %v776
          %v823 = vunpack.c.l.b16 %v777
          %v824 = vunpack.c.h.b16 %v777
          %v825 = vunpack.c.l.b16 %v778
          %v826 = vunpack.c.h.b16 %v778
          %v827 = vpack.c.b16 %v795, %v795
          %v828 = vpack.c.b16 %v796, %v796
          %v829 = vpack.c.b16 %v797, %v797
          %v830 = vpack.c.b16 %v798, %v798
          %v831 = vpack.c.b16 %v799, %v799
          %v832 = vpack.c.b16 %v800, %v800
          %v833 = vpack.c.b16 %v801, %v801
          %v834 = vpack.c.b16 %v802, %v802
          %v835 = vpack.c.b16 %v803, %v803
          %v836 = vpack.c.b16 %v804, %v804
          %v837 = vpack.c.b16 %v805, %v805
          %v838 = vpack.c.b16 %v806, %v806
          %v839 = vpack.c.b16 %v807, %v807
          %v840 = vpack.c.b16 %v808, %v808
          %v841 = vpack.c.b16 %v809, %v809
          %v842 = vpack.c.b16 %v810, %v810
          %v843 = vpack.c.b16 %v811, %v811
          %v844 = vpack.c.b16 %v812, %v812
          %v845 = vpack.c.b16 %v813, %v813
          %v846 = vpack.c.b16 %v814, %v814
          %v847 = vpack.c.b16 %v815, %v815
          %v848 = vpack.c.b16 %v816, %v816
          %v849 = vpack.c.b16 %v817, %v817
          %v850 = vpack.c.b16 %v818, %v818
          %v851 = vpack.c.b16 %v819, %v819
          %v852 = vpack.c.b16 %v820, %v820
          %v853 = vpack.c.b16 %v821, %v821
          %v854 = vpack.c.b16 %v822, %v822
          %v855 = vpack.c.b16 %v823, %v823
          %v856 = vpack.c.b16 %v824, %v824
          %v857 = vpack.c.b16 %v825, %v825
          %v858 = vpack.c.b16 %v826, %v826
          %891 = vst [vmem:[#allocation2] sm:$0xf] %v827
          %892 = vst [vmem:[#allocation2 + $0x4] sm:$0xf] %v828
          %893 = vst [vmem:[#allocation2 + $0x8] sm:$0xf] %v829
          %894 = vst [vmem:[#allocation2 + $0xc] sm:$0xf] %v830
          %895 = vst [vmem:[#allocation2 + $0x10] sm:$0xf] %v831
          %896 = vst [vmem:[#allocation2 + $0x14] sm:$0xf] %v832
          %897 = vst [vmem:[#allocation2 + $0x18] sm:$0xf] %v833
          %898 = vst [vmem:[#allocation2 + $0x1c] sm:$0xf] %v834
          %899 = vst [vmem:[#allocation2 + $0x20] sm:$0xf] %v835
          %900 = vst [vmem:[#allocation2 + $0x24] sm:$0xf] %v836
          %901 = vst [vmem:[#allocation2 + $0x28] sm:$0xf] %v837
          %902 = vst [vmem:[#allocation2 + $0x2c] sm:$0xf] %v838
          %903 = vst [vmem:[#allocation2 + $0x30] sm:$0xf] %v839
          %904 = vst [vmem:[#allocation2 + $0x34] sm:$0xf] %v840
          %905 = vst [vmem:[#allocation2 + $0x38] sm:$0xf] %v841
          %906 = vst [vmem:[#allocation2 + $0x3c] sm:$0xf] %v842
          %907 = vst [vmem:[#allocation2 + $0x40] sm:$0xf] %v843
          %908 = vst [vmem:[#allocation2 + $0x44] sm:$0xf] %v844
          %909 = vst [vmem:[#allocation2 + $0x48] sm:$0xf] %v845
          %910 = vst [vmem:[#allocation2 + $0x4c] sm:$0xf] %v846
          %911 = vst [vmem:[#allocation2 + $0x50] sm:$0xf] %v847
          %912 = vst [vmem:[#allocation2 + $0x54] sm:$0xf] %v848
          %913 = vst [vmem:[#allocation2 + $0x58] sm:$0xf] %v849
          %914 = vst [vmem:[#allocation2 + $0x5c] sm:$0xf] %v850
          %915 = vst [vmem:[#allocation2 + $0x60] sm:$0xf] %v851
          %916 = vst [vmem:[#allocation2 + $0x64] sm:$0xf] %v852
          %917 = vst [vmem:[#allocation2 + $0x68] sm:$0xf] %v853
          %918 = vst [vmem:[#allocation2 + $0x6c] sm:$0xf] %v854
          %919 = vst [vmem:[#allocation2 + $0x70] sm:$0xf] %v855
          %920 = vst [vmem:[#allocation2 + $0x74] sm:$0xf] %v856
          %921 = vst [vmem:[#allocation2 + $0x78] sm:$0xf] %v857
          %922 = vst [vmem:[#allocation2 + $0x7c] sm:$0xf] %v858
        $region52: #{tpu_custom_call.1} parent=39 // pred_fallthru
          _
        %v923 = vld [vmem:[#allocation2] sm:$0xf]
        %v924 = vld [vmem:[#allocation2 + $0x4] sm:$0xf]
        %v925 = vld [vmem:[#allocation2 + $0x8] sm:$0xf]
        %v926 = vld [vmem:[#allocation2 + $0xc] sm:$0xf]
        %v927 = vld [vmem:[#allocation2 + $0x10] sm:$0xf]
        %v928 = vld [vmem:[#allocation2 + $0x14] sm:$0xf]
        %v929 = vld [vmem:[#allocation2 + $0x18] sm:$0xf]
        %v930 = vld [vmem:[#allocation2 + $0x1c] sm:$0xf]
        %v931 = vld [vmem:[#allocation2 + $0x20] sm:$0xf]
        %v932 = vld [vmem:[#allocation2 + $0x24] sm:$0xf]
        %v933 = vld [vmem:[#allocation2 + $0x28] sm:$0xf]
        %v934 = vld [vmem:[#allocation2 + $0x2c] sm:$0xf]
        %v935 = vld [vmem:[#allocation2 + $0x30] sm:$0xf]
        %v936 = vld [vmem:[#allocation2 + $0x34] sm:$0xf]
        %v937 = vld [vmem:[#allocation2 + $0x38] sm:$0xf]
        %v938 = vld [vmem:[#allocation2 + $0x3c] sm:$0xf]
        %v939 = vld [vmem:[#allocation2 + $0x40] sm:$0xf]
        %v940 = vld [vmem:[#allocation2 + $0x44] sm:$0xf]
        %v941 = vld [vmem:[#allocation2 + $0x48] sm:$0xf]
        %v942 = vld [vmem:[#allocation2 + $0x4c] sm:$0xf]
        %v943 = vld [vmem:[#allocation2 + $0x50] sm:$0xf]
        %v944 = vld [vmem:[#allocation2 + $0x54] sm:$0xf]
        %v945 = vld [vmem:[#allocation2 + $0x58] sm:$0xf]
        %v946 = vld [vmem:[#allocation2 + $0x5c] sm:$0xf]
        %v947 = vld [vmem:[#allocation2 + $0x60] sm:$0xf]
        %v948 = vld [vmem:[#allocation2 + $0x64] sm:$0xf]
        %v949 = vld [vmem:[#allocation2 + $0x68] sm:$0xf]
        %v950 = vld [vmem:[#allocation2 + $0x6c] sm:$0xf]
        %v951 = vld [vmem:[#allocation2 + $0x70] sm:$0xf]
        %v952 = vld [vmem:[#allocation2 + $0x74] sm:$0xf]
        %v953 = vld [vmem:[#allocation2 + $0x78] sm:$0xf]
        %v954 = vld [vmem:[#allocation2 + $0x7c] sm:$0xf]
        %v955 = vld [vmem:[%s260] sm:$0xf]
        %v956 = vld [vmem:[%s260 + $0x4] sm:$0xf]
        %v957 = vld [vmem:[%s260 + $0x8] sm:$0xf]
        %v958 = vld [vmem:[%s260 + $0xc] sm:$0xf]
        %v959 = vld [vmem:[%s260 + $0x10] sm:$0xf]
        %v960 = vld [vmem:[%s260 + $0x14] sm:$0xf]
        %v961 = vld [vmem:[%s260 + $0x18] sm:$0xf]
        %v962 = vld [vmem:[%s260 + $0x1c] sm:$0xf]
        %v963 = vld [vmem:[%s260 + $0x20] sm:$0xf]
        %v964 = vld [vmem:[%s260 + $0x24] sm:$0xf]
        %v965 = vld [vmem:[%s260 + $0x28] sm:$0xf]
        %v966 = vld [vmem:[%s260 + $0x2c] sm:$0xf]
        %v967 = vld [vmem:[%s260 + $0x30] sm:$0xf]
        %v968 = vld [vmem:[%s260 + $0x34] sm:$0xf]
        %v969 = vld [vmem:[%s260 + $0x38] sm:$0xf]
        %v970 = vld [vmem:[%s260 + $0x3c] sm:$0xf]
        %v971 = vld [vmem:[%s293] sm:$0x1]
        %v973 = vlaneseq
        %v974 = vshrl.u32 %v973, 7
        %v975 = vsub.s32 0, %v974
        %v976 = vrot.slane %v971, %v975
        %v1010 = vunpack.c.l.b16 %v923
        %v1011 = vunpack.c.l.b16 %v924
        %v1012 = vunpack.c.l.b16 %v925
        %v1013 = vunpack.c.l.b16 %v926
        %v1014 = vunpack.c.l.b16 %v927
        %v1015 = vunpack.c.l.b16 %v928
        %v1016 = vunpack.c.l.b16 %v929
        %v1017 = vunpack.c.l.b16 %v930
        %v1018 = vunpack.c.l.b16 %v931
        %v1019 = vunpack.c.l.b16 %v932
        %v1020 = vunpack.c.l.b16 %v933
        %v1021 = vunpack.c.l.b16 %v934
        %v1022 = vunpack.c.l.b16 %v935
        %v1023 = vunpack.c.l.b16 %v936
        %v1024 = vunpack.c.l.b16 %v937
        %v1025 = vunpack.c.l.b16 %v938
        %v1026 = vunpack.c.l.b16 %v939
        %v1027 = vunpack.c.l.b16 %v940
        %v1028 = vunpack.c.l.b16 %v941
        %v1029 = vunpack.c.l.b16 %v942
        %v1030 = vunpack.c.l.b16 %v943
        %v1031 = vunpack.c.l.b16 %v944
        %v1032 = vunpack.c.l.b16 %v945
        %v1033 = vunpack.c.l.b16 %v946
        %v1034 = vunpack.c.l.b16 %v947
        %v1035 = vunpack.c.l.b16 %v948
        %v1036 = vunpack.c.l.b16 %v949
        %v1037 = vunpack.c.l.b16 %v950
        %v1038 = vunpack.c.l.b16 %v951
        %v1039 = vunpack.c.l.b16 %v952
        %v1040 = vunpack.c.l.b16 %v953
        %v1041 = vunpack.c.l.b16 %v954
        %v1042 = vpack.c.b16 %v1011, %v1010
        %v1043 = vpack.c.b16 %v1013, %v1012
        %v1044 = vpack.c.b16 %v1015, %v1014
        %v1045 = vpack.c.b16 %v1017, %v1016
        %v1046 = vpack.c.b16 %v1019, %v1018
        %v1047 = vpack.c.b16 %v1021, %v1020
        %v1048 = vpack.c.b16 %v1023, %v1022
        %v1049 = vpack.c.b16 %v1025, %v1024
        %v1050 = vpack.c.b16 %v1027, %v1026
        %v1051 = vpack.c.b16 %v1029, %v1028
        %v1052 = vpack.c.b16 %v1031, %v1030
        %v1053 = vpack.c.b16 %v1033, %v1032
        %v1054 = vpack.c.b16 %v1035, %v1034
        %v1055 = vpack.c.b16 %v1037, %v1036
        %v1056 = vpack.c.b16 %v1039, %v1038
        %v1057 = vpack.c.b16 %v1041, %v1040
        %v1090 = vunpack.c.l.b16 %v955
        %v1091 = vunpack.c.l.b16 %v956
        %v1092 = vunpack.c.l.b16 %v957
        %v1093 = vunpack.c.l.b16 %v958
        %v1094 = vunpack.c.l.b16 %v959
        %v1095 = vunpack.c.l.b16 %v960
        %v1096 = vunpack.c.l.b16 %v961
        %v1097 = vunpack.c.l.b16 %v962
        %v1098 = vunpack.c.l.b16 %v963
        %v1099 = vunpack.c.l.b16 %v964
        %v1100 = vunpack.c.l.b16 %v965
        %v1101 = vunpack.c.l.b16 %v966
        %v1102 = vunpack.c.l.b16 %v967
        %v1103 = vunpack.c.l.b16 %v968
        %v1104 = vunpack.c.l.b16 %v969
        %v1105 = vunpack.c.l.b16 %v970
        %v1106 = vpack.c.b16 %v1091, %v1090
        %v1107 = vpack.c.b16 %v1093, %v1092
        %v1108 = vpack.c.b16 %v1095, %v1094
        %v1109 = vpack.c.b16 %v1097, %v1096
        %v1110 = vpack.c.b16 %v1099, %v1098
        %v1111 = vpack.c.b16 %v1101, %v1100
        %v1112 = vpack.c.b16 %v1103, %v1102
        %v1113 = vpack.c.b16 %v1105, %v1104
        %1122 = vmatprep.subr.bf16.mxu0 0
        %1123 = vmatpush1.bf16.msra.mxu0 %v1113
        %1124 = vmatprep.subr.bf16.mxu0 0
        %1125 = vmatpush1.bf16.msra.mxu0 %v1112
        %1126 = vmatprep.subr.bf16.mxu0 0
        %1127 = vmatpush1.bf16.msra.mxu0 %v1111
        %1128 = vmatprep.subr.bf16.mxu0 0
        %1129 = vmatpush1.bf16.msra.mxu0 %v1110
        %1130 = vmatprep.subr.bf16.mxu0 0
        %1131 = vmatpush1.bf16.msra.mxu0 %v1109
        %1132 = vmatprep.subr.bf16.mxu0 0
        %1133 = vmatpush1.bf16.msra.mxu0 %v1108
        %1134 = vmatprep.subr.bf16.mxu0 0
        %1135 = vmatpush1.bf16.msra.mxu0 %v1107
        %1136 = vmatprep.subr.bf16.mxu0 0
        %1137 = vmatpush1.bf16.msra.mxu0 %v1106
        %1138 = vmatprep.subr.bf16.mxu0 0
        %1139 = vmatpush2.bf16.msra.mxu0 0
        %1140 = vmatprep.subr.bf16.mxu0 0
        %1141 = vmatpush2.bf16.msra.mxu0 0
        %1142 = vmatprep.subr.bf16.mxu0 0
        %1143 = vmatpush2.bf16.msra.mxu0 0
        %1144 = vmatprep.subr.bf16.mxu0 0
        %1145 = vmatpush2.bf16.msra.mxu0 0
        %1146 = vmatprep.subr.bf16.mxu0 0
        %1147 = vmatpush2.bf16.msra.mxu0 0
        %1148 = vmatprep.subr.bf16.mxu0 0
        %1149 = vmatpush2.bf16.msra.mxu0 0
        %1150 = vmatprep.subr.bf16.mxu0 0
        %1151 = vmatpush2.bf16.msra.mxu0 0
        %1152 = vmatprep.subr.bf16.mxu0 0
        %1153 = vmatpush2.bf16.msra.mxu0 0
        %1154 = vmatprep.mubr.bf16.mxu0 0
        %1155 = vmatmul.mubr.bf16.gmra.mxu0 %v1042
        %v1156 = vpop.f32.mrf.mxu0
        %v1157 = vadd.f32 %v976, %v1156
        %v1158 = vpop.f32.mrf.mxu0
        %v1159 = vpop.f32.mrf.mxu0
        %v1160 = vadd.f32 %v976, %v1159
        %v1161 = vpop.f32.mrf.mxu0
        %1162 = vmatprep.mubr.bf16.mxu0 0
        %1163 = vmatmul.mubr.bf16.gmra.mxu0 %v1043
        %v1164 = vpop.f32.mrf.mxu0
        %v1165 = vadd.f32 %v976, %v1164
        %v1166 = vpop.f32.mrf.mxu0
        %v1167 = vpop.f32.mrf.mxu0
        %v1168 = vadd.f32 %v976, %v1167
        %v1169 = vpop.f32.mrf.mxu0
        %1170 = vmatprep.mubr.bf16.mxu0 0
        %1171 = vmatmul.mubr.bf16.gmra.mxu0 %v1044
        %v1172 = vpop.f32.mrf.mxu0
        %v1173 = vadd.f32 %v976, %v1172
        %v1174 = vpop.f32.mrf.mxu0
        %v1175 = vpop.f32.mrf.mxu0
        %v1176 = vadd.f32 %v976, %v1175
        %v1177 = vpop.f32.mrf.mxu0
        %1178 = vmatprep.mubr.bf16.mxu0 0
        %1179 = vmatmul.mubr.bf16.gmra.mxu0 %v1045
        %v1180 = vpop.f32.mrf.mxu0
        %v1181 = vadd.f32 %v976, %v1180
        %v1182 = vpop.f32.mrf.mxu0
        %v1183 = vpop.f32.mrf.mxu0
        %v1184 = vadd.f32 %v976, %v1183
        %v1185 = vpop.f32.mrf.mxu0
        %1186 = vmatprep.mubr.bf16.mxu0 0
        %1187 = vmatmul.mubr.bf16.gmra.mxu0 %v1046
        %v1188 = vpop.f32.mrf.mxu0
        %v1189 = vadd.f32 %v976, %v1188
        %v1190 = vpop.f32.mrf.mxu0
        %v1191 = vpop.f32.mrf.mxu0
        %v1192 = vadd.f32 %v976, %v1191
        %v1193 = vpop.f32.mrf.mxu0
        %1194 = vmatprep.mubr.bf16.mxu0 0
        %1195 = vmatmul.mubr.bf16.gmra.mxu0 %v1047
        %v1196 = vpop.f32.mrf.mxu0
        %v1197 = vadd.f32 %v976, %v1196
        %v1198 = vpop.f32.mrf.mxu0
        %v1199 = vpop.f32.mrf.mxu0
        %v1200 = vadd.f32 %v976, %v1199
        %v1201 = vpop.f32.mrf.mxu0
        %1202 = vmatprep.mubr.bf16.mxu0 0
        %1203 = vmatmul.mubr.bf16.gmra.mxu0 %v1048
        %v1204 = vpop.f32.mrf.mxu0
        %v1205 = vadd.f32 %v976, %v1204
        %v1206 = vpop.f32.mrf.mxu0
        %v1207 = vpop.f32.mrf.mxu0
        %v1208 = vadd.f32 %v976, %v1207
        %v1209 = vpop.f32.mrf.mxu0
        %1210 = vmatprep.mubr.bf16.mxu0 0
        %1211 = vmatmul.mubr.bf16.gmra.mxu0 %v1049
        %v1212 = vpop.f32.mrf.mxu0
        %v1213 = vadd.f32 %v976, %v1212
        %v1214 = vpop.f32.mrf.mxu0
        %v1215 = vpop.f32.mrf.mxu0
        %v1216 = vadd.f32 %v976, %v1215
        %v1217 = vpop.f32.mrf.mxu0
        %1218 = vmatprep.mubr.bf16.mxu0 0
        %1219 = vmatmul.mubr.bf16.gmra.mxu0 %v1050
        %v1220 = vpop.f32.mrf.mxu0
        %v1221 = vadd.f32 %v976, %v1220
        %v1222 = vpop.f32.mrf.mxu0
        %v1223 = vpop.f32.mrf.mxu0
        %v1224 = vadd.f32 %v976, %v1223
        %v1225 = vpop.f32.mrf.mxu0
        %1226 = vmatprep.mubr.bf16.mxu0 0
        %1227 = vmatmul.mubr.bf16.gmra.mxu0 %v1051
        %v1228 = vpop.f32.mrf.mxu0
        %v1229 = vadd.f32 %v976, %v1228
        %v1230 = vpop.f32.mrf.mxu0
        %v1231 = vpop.f32.mrf.mxu0
        %v1232 = vadd.f32 %v976, %v1231
        %v1233 = vpop.f32.mrf.mxu0
        %1234 = vmatprep.mubr.bf16.mxu0 0
        %1235 = vmatmul.mubr.bf16.gmra.mxu0 %v1052
        %v1236 = vpop.f32.mrf.mxu0
        %v1237 = vadd.f32 %v976, %v1236
        %v1238 = vpop.f32.mrf.mxu0
        %v1239 = vpop.f32.mrf.mxu0
        %v1240 = vadd.f32 %v976, %v1239
        %v1241 = vpop.f32.mrf.mxu0
        %1242 = vmatprep.mubr.bf16.mxu0 0
        %1243 = vmatmul.mubr.bf16.gmra.mxu0 %v1053
        %v1244 = vpop.f32.mrf.mxu0
        %v1245 = vadd.f32 %v976, %v1244
        %v1246 = vpop.f32.mrf.mxu0
        %v1247 = vpop.f32.mrf.mxu0
        %v1248 = vadd.f32 %v976, %v1247
        %v1249 = vpop.f32.mrf.mxu0
        %1250 = vmatprep.mubr.bf16.mxu0 0
        %1251 = vmatmul.mubr.bf16.gmra.mxu0 %v1054
        %v1252 = vpop.f32.mrf.mxu0
        %v1253 = vadd.f32 %v976, %v1252
        %v1254 = vpop.f32.mrf.mxu0
        %v1255 = vpop.f32.mrf.mxu0
        %v1256 = vadd.f32 %v976, %v1255
        %v1257 = vpop.f32.mrf.mxu0
        %1258 = vmatprep.mubr.bf16.mxu0 0
        %1259 = vmatmul.mubr.bf16.gmra.mxu0 %v1055
        %v1260 = vpop.f32.mrf.mxu0
        %v1261 = vadd.f32 %v976, %v1260
        %v1262 = vpop.f32.mrf.mxu0
        %v1263 = vpop.f32.mrf.mxu0
        %v1264 = vadd.f32 %v976, %v1263
        %v1265 = vpop.f32.mrf.mxu0
        %1266 = vmatprep.mubr.bf16.mxu0 0
        %1267 = vmatmul.mubr.bf16.gmra.mxu0 %v1056
        %v1268 = vpop.f32.mrf.mxu0
        %v1269 = vadd.f32 %v976, %v1268
        %v1270 = vpop.f32.mrf.mxu0
        %v1271 = vpop.f32.mrf.mxu0
        %v1272 = vadd.f32 %v976, %v1271
        %v1273 = vpop.f32.mrf.mxu0
        %1274 = vmatprep.mubr.bf16.mxu0 0
        %1275 = vmatmul.mubr.bf16.gmra.mxu0 %v1057
        %v1276 = vpop.f32.mrf.mxu0
        %v1277 = vadd.f32 %v976, %v1276
        %v1278 = vpop.f32.mrf.mxu0
        %v1279 = vpop.f32.mrf.mxu0
        %v1280 = vadd.f32 %v976, %v1279
        %v1281 = vpop.f32.mrf.mxu0
        %1282 = vdwg.mxu0
        %v1283 = vpack.c.bf16 %v1160, %v1157
        %v1284 = vpack.c.bf16 %v1168, %v1165
        %v1285 = vpack.c.bf16 %v1176, %v1173
        %v1286 = vpack.c.bf16 %v1184, %v1181
        %v1287 = vpack.c.bf16 %v1192, %v1189
        %v1288 = vpack.c.bf16 %v1200, %v1197
        %v1289 = vpack.c.bf16 %v1208, %v1205
        %v1290 = vpack.c.bf16 %v1216, %v1213
        %v1291 = vpack.c.bf16 %v1224, %v1221
        %v1292 = vpack.c.bf16 %v1232, %v1229
        %v1293 = vpack.c.bf16 %v1240, %v1237
        %v1294 = vpack.c.bf16 %v1248, %v1245
        %v1295 = vpack.c.bf16 %v1256, %v1253
        %v1296 = vpack.c.bf16 %v1264, %v1261
        %v1297 = vpack.c.bf16 %v1272, %v1269
        %v1298 = vpack.c.bf16 %v1280, %v1277
        %v1315 = vunpack.c.l.b16 %v1283
        %v1316 = vunpack.c.h.b16 %v1283
        %v1317 = vunpack.c.l.b16 %v1284
        %v1318 = vunpack.c.h.b16 %v1284
        %v1319 = vunpack.c.l.b16 %v1285
        %v1320 = vunpack.c.h.b16 %v1285
        %v1321 = vunpack.c.l.b16 %v1286
        %v1322 = vunpack.c.h.b16 %v1286
        %v1323 = vunpack.c.l.b16 %v1287
        %v1324 = vunpack.c.h.b16 %v1287
        %v1325 = vunpack.c.l.b16 %v1288
        %v1326 = vunpack.c.h.b16 %v1288
        %v1327 = vunpack.c.l.b16 %v1289
        %v1328 = vunpack.c.h.b16 %v1289
        %v1329 = vunpack.c.l.b16 %v1290
        %v1330 = vunpack.c.h.b16 %v1290
        %v1331 = vunpack.c.l.b16 %v1291
        %v1332 = vunpack.c.h.b16 %v1291
        %v1333 = vunpack.c.l.b16 %v1292
        %v1334 = vunpack.c.h.b16 %v1292
        %v1335 = vunpack.c.l.b16 %v1293
        %v1336 = vunpack.c.h.b16 %v1293
        %v1337 = vunpack.c.l.b16 %v1294
        %v1338 = vunpack.c.h.b16 %v1294
        %v1339 = vunpack.c.l.b16 %v1295
        %v1340 = vunpack.c.h.b16 %v1295
        %v1341 = vunpack.c.l.b16 %v1296
        %v1342 = vunpack.c.h.b16 %v1296
        %v1343 = vunpack.c.l.b16 %v1297
        %v1344 = vunpack.c.h.b16 %v1297
        %v1345 = vunpack.c.l.b16 %v1298
        %v1346 = vunpack.c.h.b16 %v1298
        %v1347 = vpack.c.b16 %v1315, %v1315
        %v1348 = vpack.c.b16 %v1316, %v1316
        %v1349 = vpack.c.b16 %v1317, %v1317
        %v1350 = vpack.c.b16 %v1318, %v1318
        %v1351 = vpack.c.b16 %v1319, %v1319
        %v1352 = vpack.c.b16 %v1320, %v1320
        %v1353 = vpack.c.b16 %v1321, %v1321
        %v1354 = vpack.c.b16 %v1322, %v1322
        %v1355 = vpack.c.b16 %v1323, %v1323
        %v1356 = vpack.c.b16 %v1324, %v1324
        %v1357 = vpack.c.b16 %v1325, %v1325
        %v1358 = vpack.c.b16 %v1326, %v1326
        %v1359 = vpack.c.b16 %v1327, %v1327
        %v1360 = vpack.c.b16 %v1328, %v1328
        %v1361 = vpack.c.b16 %v1329, %v1329
        %v1362 = vpack.c.b16 %v1330, %v1330
        %v1363 = vpack.c.b16 %v1331, %v1331
        %v1364 = vpack.c.b16 %v1332, %v1332
        %v1365 = vpack.c.b16 %v1333, %v1333
        %v1366 = vpack.c.b16 %v1334, %v1334
        %v1367 = vpack.c.b16 %v1335, %v1335
        %v1368 = vpack.c.b16 %v1336, %v1336
        %v1369 = vpack.c.b16 %v1337, %v1337
        %v1370 = vpack.c.b16 %v1338, %v1338
        %v1371 = vpack.c.b16 %v1339, %v1339
        %v1372 = vpack.c.b16 %v1340, %v1340
        %v1373 = vpack.c.b16 %v1341, %v1341
        %v1374 = vpack.c.b16 %v1342, %v1342
        %v1375 = vpack.c.b16 %v1343, %v1343
        %v1376 = vpack.c.b16 %v1344, %v1344
        %v1377 = vpack.c.b16 %v1345, %v1345
        %v1378 = vpack.c.b16 %v1346, %v1346
        %1411 = vst [vmem:[%s289] sm:$0xf] %v1347
        %1412 = vst [vmem:[%s289 + $0x4] sm:$0xf] %v1348
        %1413 = vst [vmem:[%s289 + $0x8] sm:$0xf] %v1349
        %1414 = vst [vmem:[%s289 + $0xc] sm:$0xf] %v1350
        %1415 = vst [vmem:[%s289 + $0x10] sm:$0xf] %v1351
        %1416 = vst [vmem:[%s289 + $0x14] sm:$0xf] %v1352
        %1417 = vst [vmem:[%s289 + $0x18] sm:$0xf] %v1353
        %1418 = vst [vmem:[%s289 + $0x1c] sm:$0xf] %v1354
        %1419 = vst [vmem:[%s289 + $0x20] sm:$0xf] %v1355
        %1420 = vst [vmem:[%s289 + $0x24] sm:$0xf] %v1356
        %1421 = vst [vmem:[%s289 + $0x28] sm:$0xf] %v1357
        %1422 = vst [vmem:[%s289 + $0x2c] sm:$0xf] %v1358
        %1423 = vst [vmem:[%s289 + $0x30] sm:$0xf] %v1359
        %1424 = vst [vmem:[%s289 + $0x34] sm:$0xf] %v1360
        %1425 = vst [vmem:[%s289 + $0x38] sm:$0xf] %v1361
        %1426 = vst [vmem:[%s289 + $0x3c] sm:$0xf] %v1362
        %1427 = vst [vmem:[%s289 + $0x40] sm:$0xf] %v1363
        %1428 = vst [vmem:[%s289 + $0x44] sm:$0xf] %v1364
        %1429 = vst [vmem:[%s289 + $0x48] sm:$0xf] %v1365
        %1430 = vst [vmem:[%s289 + $0x4c] sm:$0xf] %v1366
        %1431 = vst [vmem:[%s289 + $0x50] sm:$0xf] %v1367
        %1432 = vst [vmem:[%s289 + $0x54] sm:$0xf] %v1368
        %1433 = vst [vmem:[%s289 + $0x58] sm:$0xf] %v1369
        %1434 = vst [vmem:[%s289 + $0x5c] sm:$0xf] %v1370
        %1435 = vst [vmem:[%s289 + $0x60] sm:$0xf] %v1371
        %1436 = vst [vmem:[%s289 + $0x64] sm:$0xf] %v1372
        %1437 = vst [vmem:[%s289 + $0x68] sm:$0xf] %v1373
        %1438 = vst [vmem:[%s289 + $0x6c] sm:$0xf] %v1374
        %1439 = vst [vmem:[%s289 + $0x70] sm:$0xf] %v1375
        %1440 = vst [vmem:[%s289 + $0x74] sm:$0xf] %v1376
        %1441 = vst [vmem:[%s289 + $0x78] sm:$0xf] %v1377
        %1442 = vst [vmem:[%s289 + $0x7c] sm:$0xf] %v1378
        %s1443 = sand.u32 %s165, 1
        %s1444 = scalar_lea.sflag [#allocation5], %s1443
        %s1445 = sand.u32 %s165, 1
        %s1446 = smul.addr %s1445, 128
        %s1447 = scalar_lea.vmem [#allocation8], %s1446
        // Predicated region
        $region53: #{tpu_custom_call.1} parent=39 // pred_check
          %p1448 = pneg %p175
        $region54: #{tpu_custom_call.1} parent=39 // pred_check_branch
          %1450 = sbr.rel (%p1448) target = $region56
        $region55: #{tpu_custom_call.1} parent=39 // pred_region
          %s1451 = smul.u32 32, %s27
          %s1453 = ssub.s32 2048, 2048
          %1454 = vsyncadd %s1444, %s1453
          %s1455 = smul.addr %s1451, 3
          %s1456 = sadd.s32 %s28, %s1455
          %s1457 = smul.addr %s1456, 64
          %s1458 = scalar_lea.hbm %s5, %s1457
          %s1459 = sshll.u32 %s1447, 4
          %s1460 = int_to_ptr.vmem [resolvable:$true] %s1459
          %1465 = dma.vmem_to_hbm [thread:$0]  %s1460, 2048, %s1458, %s1444, 64, 192, 4
        $region56: #{tpu_custom_call.1} parent=39 // pred_fallthru
          _
      $region40: #{tpu_custom_call.1} parent=5 // pred_fallthru
        _
      %p1466 = scmp.le.s32.totalorder 2, %s18
      // Predicated region
      $region57: #{tpu_custom_call.1} parent=5 // pred_check
        %p1467 = pneg %p1466
      $region58: #{tpu_custom_call.1} parent=5 // pred_check_branch
        %1469 = sbr.rel (%p1467) target = $region60
      $region59: #{tpu_custom_call.1} parent=5 // pred_region
        %s1470 = ssub.s32 %s18, 2
        // Predicated region
        $region61: #{tpu_custom_call.1} parent=59 // pred_check
          %p1471 = pneg %p181
        $region62: #{tpu_custom_call.1} parent=59 // pred_check_branch
          %1473 = sbr.rel (%p1471) target = $region64
        $region63: #{tpu_custom_call.1} parent=59 // pred_region
          %s1474 = sand.u32 %s166, 1
          %s1475 = scalar_lea.sflag [#allocation5], %s1474
          %s1476 = sand.u32 %s166, 1
          %s1477 = smul.addr %s1476, 128
          %s1478 = scalar_lea.vmem [#allocation8], %s1477
          %1479 = dma.done %s1475, 2048
        $region64: #{tpu_custom_call.1} parent=59 // pred_fallthru
          _
      $region60: #{tpu_custom_call.1} parent=5 // pred_fallthru
        _
    $region6: #{tpu_custom_call.1} parent=1 // loop_footer
      %s22 = sadd.s32 1, %s18
    $region7: #{tpu_custom_call.1} parent=1 // loop_footer_branch
      %17 = sbr.rel target = $region3
    $region8: #{tpu_custom_call.1} parent=1 // loop_exit
      _
    %1480 = vsyncpa [#allocation4], 1
    %s1481 = scalar_lea.sflag [#allocation4], 1
    %1482 = vsyncpa %s1481, 1
    %1483 = vsyncpa [#allocation7], 1
    %s1484 = scalar_lea.sflag [#allocation7], 1
    %1485 = vsyncpa %s1484, 1
    %1486 = vsyncpa [#allocation5], 1
    %s1487 = scalar_lea.sflag [#allocation5], 1
    %1488 = vsyncpa %s1487, 1

</llo_original>
